<compile_context>
chip_gen: v7x
topology: tpu7x:2x2x1
jax: 0.10.0
libtpu: 0.0.40
codegen_flags: <defaults>
</compile_context>

<pallas_src>
import jax
import jax.numpy as jnp
from jax.experimental import pallas as pl
from jax.experimental.pallas import tpu as pltpu

_NEG = -1e30  # bias for padded class lanes -> excluded from the softmax


# ----------------------------------------------------------------------------
# Kernels
# ----------------------------------------------------------------------------
def _as_mxu_counts(a):
    """(A+I) holds small non-negative integer counts.  Upcast compact int8
    storage to bf16 for the MXU (exact for integers <= 256); bf16/f32 pass
    through unchanged."""
    return a.astype(jnp.bfloat16) if jnp.issubdtype(a.dtype, jnp.integer) else a


def _proj1_kernel(x_ref, w1_ref, d_ref, xw1s_ref):
    """xw1s = d * (X @ W1)   (source-side normalization of layer-1 aggregation)."""
    xw1 = jnp.dot(x_ref[...], w1_ref[...], preferred_element_type=jnp.float32)
    xw1s_ref[...] = (d_ref[...] * xw1).astype(xw1s_ref.dtype)


def _agg1_proj2_kernel(a_ref, xw1s_ref, d_ref, b1_ref, w2_ref, hw2s_ref):
    """h = relu(d * ((A+I)_tile @ xw1s) + b1);  hw2s = d * (h @ W2)."""
    a = _as_mxu_counts(a_ref[...])
    agg = jnp.dot(a, xw1s_ref[...], preferred_element_type=jnp.float32)
    d = d_ref[...]                              # (tile_m, 1) f32
    h = jnp.maximum(d * agg + b1_ref[...], 0.0)
    hw2 = jnp.dot(h.astype(jnp.bfloat16), w2_ref[...],
                  preferred_element_type=jnp.float32)
    hw2s_ref[...] = (d * hw2).astype(hw2s_ref.dtype)


def _agg2_logsoftmax_kernel(a_ref, hw2s_ref, d_ref, b2_ref, o_ref):
    """z = d * ((A+I)_tile @ hw2s) + b2;  out = log_softmax(z) over the lane axis."""
    a = _as_mxu_counts(a_ref[...])
    agg = jnp.dot(a, hw2s_ref[...], preferred_element_type=jnp.float32)
    z = d_ref[...] * agg + b2_ref[...]          # padded class lanes carry -1e30 via b2
    m = jnp.max(z, axis=1, keepdims=True)
    shifted = z - m
    o_ref[...] = shifted - jnp.log(jnp.sum(jnp.exp(shifted), axis=1, keepdims=True))


def _fused_kernel(a_ref, x_ref, d_ref, w1_ref, b1_ref, w2_ref, b2_ref, o_ref):
    """Whole forward in one call; (A+I) stays resident in VMEM -> one HBM read."""
    a = _as_mxu_counts(a_ref[...])
    d = d_ref[...]                              # (n_pad, 1) f32
    xw1 = jnp.dot(x_ref[...], w1_ref[...], preferred_element_type=jnp.float32)
    xw1s = (d * xw1).astype(jnp.bfloat16)
    h = jnp.maximum(d * jnp.dot(a, xw1s, preferred_element_type=jnp.float32)
                    + b1_ref[...], 0.0)
    hw2 = jnp.dot(h.astype(jnp.bfloat16), w2_ref[...],
                  preferred_element_type=jnp.float32)
    hw2s = (d * hw2).astype(jnp.bfloat16)
    z = d * jnp.dot(a, hw2s, preferred_element_type=jnp.float32) + b2_ref[...]
    m = jnp.max(z, axis=1, keepdims=True)
    shifted = z - m
    o_ref[...] = shifted - jnp.log(jnp.sum(jnp.exp(shifted), axis=1, keepdims=True))


# ----------------------------------------------------------------------------
# Helpers
# ----------------------------------------------------------------------------
def _round_up(x, m):
    return (x + m - 1) // m * m


def _vmem_limit_bytes():
    cap = 64 << 20                    # conservative default = v7x physical VMEM
    try:
        cap = int(pltpu.get_tpu_info().vmem_capacity_bytes)
    except Exception:
        pass
    # headroom for compiler-internal scratch: ~96 MiB on v5e/v6e, ~48 MiB on v7x
    return (cap * 3) // 4


def _fused_vmem_bytes(n_pad, f, h, cp, a_item):
    """Rough (generous) VMEM footprint of the fused single-call path."""
    return (n_pad * n_pad * (a_item + 2)                 # A + in-kernel bf16 upcast
            + n_pad * (2 * f + 12 * h + 14 * cp + 8)     # x, activations, temps
            + 2 * f * h + 2 * h * cp + 4 * (h + cp))     # weights + biases


def _pick_tile_m(n, h, cp, a_item, vmem_limit, res_buf):
    """Largest row tile (<=1024, multiple of 128) whose worst-pass footprint
    (double-buffered A tile + bf16 upcast + residents + output tiles) fits the
    scoped VMEM limit while keeping grid_m >= 2 (both TensorCores busy on v7x;
    one cheap extra grid step on single-TC chips)."""
    budget = (vmem_limit * 4) // 5
    n128 = _round_up(n, 128)
    for tile in (1024, 512, 256, 128):
        if tile > n128:
            continue
        n_pad = _round_up(n, tile)
        if n_pad // tile < 2 and n > 128:
            continue                                       # keep >= 2 row tiles
        a_blk = 2 * tile * n_pad * a_item                  # double-buffered A tile
        up = 2 * tile * n_pad                              # in-kernel int8->bf16 upcast
        p2 = (a_blk + up + res_buf * (2 * n_pad * h + 2 * h * cp + 4 * h)
              + 8 * tile + 4 * tile * cp)
        p3 = (a_blk + up + res_buf * (2 * n_pad * cp + 4 * cp)
              + 8 * tile + 8 * tile * cp)
        if max(p2, p3) <= budget:
            return tile
    return 128


def _tiled(rows, cols):        # row-tiled block of an (n_pad, cols) array
    return pl.BlockSpec((rows, cols), lambda i: (i, 0))


def _resident(rows, cols, single_buffer):
    """Fully-resident block (same block index every grid step).  With
    single_buffer=True, request one VMEM buffer instead of the default double
    buffer (the block is never re-fetched anyway)."""
    if single_buffer:
        return pl.BlockSpec((rows, cols), lambda i: (0, 0),
                            pipeline_mode=pl.Buffered(1))
    return pl.BlockSpec((rows, cols), lambda i: (0, 0))


def _row_call(kernel, grid_m, out_shape, in_specs, out_spec, vmem_limit):
    return pl.pallas_call(
        kernel,
        out_shape=out_shape,
        grid_spec=pltpu.PrefetchScalarGridSpec(
            num_scalar_prefetch=0,
            grid=(grid_m,),
            in_specs=in_specs,
            out_specs=out_spec,
        ),
        compiler_params=pltpu.CompilerParams(
            dimension_semantics=("parallel",),   # megacore: split row tiles on v7x
            vmem_limit_bytes=vmem_limit,
        ),
    )


def _dense_adj(src, dst, n, n_pad, a_dtype):
    """Dense (A + I) duplicate-summed edge-count pattern, materialized directly
    in the streaming dtype (no dense f32 intermediate).  Explicit self loops get
    weight exactly 1 (PyG gcn_norm / add_remaining_self_loops convention)."""
    idx = jnp.arange(n, dtype=jnp.int32)
    w = src != dst
    try:
        adj = jnp.zeros((n_pad, n_pad), a_dtype).at[dst, src].add(w.astype(a_dtype))
        adj = adj.at[idx, idx].add(jnp.ones((n,), a_dtype))
        return jax.block_until_ready(adj)
    except Exception:
        # Fallback if scatter-add in the compact dtype is rejected by the backend.
        adj = jnp.zeros((n_pad, n_pad), jnp.float32).at[dst, src].add(
            w.astype(jnp.float32))
        adj = adj.at[idx, idx].add(1.0)
        return adj.astype(a_dtype)


# ----------------------------------------------------------------------------
# Forward pass
# ----------------------------------------------------------------------------
def node_classifier_forward(x, edge_index, params, *, tile_m=None, a_dtype="auto",
                            fuse="auto", single_buffer_residents=True):
    """NodeClassifier forward: 2-layer GCN + log_softmax.

    Runs eagerly: the "auto" a_dtype decision inspects a concrete degree value,
    so do not wrap this function in jax.jit with a_dtype="auto".
    """
    w1, b1, w2, b2 = params
    n, f = x.shape
    h_dim = w1.shape[1]
    c = w2.shape[1]
    cp = _round_up(c, 128)                # lane-dense class dim (unmasked stores)
    vmem_limit = _vmem_limit_bytes()

    src = edge_index[0].astype(jnp.int32)
    dst = edge_index[1].astype(jnp.int32)

    # O(E) degrees: deg[i] = (# incoming non-self-loop edges) + 1 (self loop).
    deg = jax.ops.segment_sum((src != dst).astype(jnp.float32), dst,
                              num_segments=n) + 1.0

    if a_dtype == "auto":
        # Per-entry multiplicity <= row degree, so max(deg) bounds every count.
        max_count = int(jnp.max(deg))
        if max_count <= 127:
            a_dtype = jnp.int8            # half the HBM bytes of bf16
        elif max_count <= 255:
            a_dtype = jnp.bfloat16        # bf16 exact for integer counts <= 256
        else:
            a_dtype = jnp.float32
    a_item = jnp.dtype(a_dtype).itemsize

    if fuse == "auto":
        fuse = (_fused_vmem_bytes(_round_up(n, 128), f, h_dim, cp, a_item)
                <= vmem_limit // 2)

    res_buf = 1 if single_buffer_residents else 2
    if fuse:
        n_pad = _round_up(n, 128)
        grid_m = 1
    else:
        if tile_m is None:
            tile_m = _pick_tile_m(n, h_dim, cp, a_item, vmem_limit, res_buf)
        tile_m = max(128, min(_round_up(tile_m, 128), _round_up(n, 128)))
        n_pad = _round_up(n, tile_m)
        grid_m = n_pad // tile_m

    # --- graph + operand preparation (O(E) + O(N) + one O(N^2) compact write) --
    adj = _dense_adj(src, dst, n, n_pad, a_dtype)
    d_vec = jnp.zeros((n_pad,), jnp.float32).at[:n].set(deg)
    d = jnp.where(d_vec > 0.0, jax.lax.rsqrt(jnp.maximum(d_vec, 1.0)),
                  0.0).reshape(n_pad, 1)

    x_p = jnp.zeros((n_pad, f), jnp.bfloat16).at[:n, :].set(x.astype(jnp.bfloat16))
    w1_b = w1.astype(jnp.bfloat16)
    b1_f = jnp.reshape(b1, (1, h_dim)).astype(jnp.float32)
    w2_p = jnp.zeros((h_dim, cp), jnp.bfloat16).at[:, :c].set(w2.astype(jnp.bfloat16))
    b2_p = jnp.full((1, cp), _NEG, jnp.float32).at[:, :c].set(
        jnp.reshape(b2, (1, c)).astype(jnp.float32))

    if fuse:
        # Single call: (A+I) is DMA'd into VMEM once and reused for both
        # aggregations (removes the second full O(N^2) HBM read of A).
        out_p = pl.pallas_call(
            _fused_kernel,
            out_shape=jax.ShapeDtypeStruct((n_pad, cp), jnp.float32),
            compiler_params=pltpu.CompilerParams(vmem_limit_bytes=vmem_limit),
        )(adj, x_p, d, w1_b, b1_f, w2_p, b2_p)
        return out_p[:n, :c]

    res = lambda r, co: _resident(r, co, single_buffer_residents)

    # ---- pass 1: xw1s = d * (X @ W1)   (row-local) ---------------------------
    xw1s = _row_call(
        _proj1_kernel, grid_m,
        jax.ShapeDtypeStruct((n_pad, h_dim), jnp.bfloat16),
        [_tiled(tile_m, f), res(f, h_dim), _tiled(tile_m, 1)],
        _tiled(tile_m, h_dim), vmem_limit,
    )(x_p, w1_b, d)

    # ---- pass 2: h = relu(d * ((A+I) @ xw1s) + b1);  hw2s = d * (h @ W2) -----
    hw2s = _row_call(
        _agg1_proj2_kernel, grid_m,
        jax.ShapeDtypeStruct((n_pad, cp), jnp.bfloat16),
        [_tiled(tile_m, n_pad), res(n_pad, h_dim), _tiled(tile_m, 1),
         res(1, h_dim), res(h_dim, cp)],
        _tiled(tile_m, cp), vmem_limit,
    )(adj, xw1s, d, b1_f, w2_p)

    # ---- pass 3: z = d * ((A+I) @ hw2s) + b2;  out = log_softmax(z) ----------
    out_p = _row_call(
        _agg2_logsoftmax_kernel, grid_m,
        jax.ShapeDtypeStruct((n_pad, cp), jnp.float32),
        [_tiled(tile_m, n_pad), res(n_pad, cp), _tiled(tile_m, 1), res(1, cp)],
        _tiled(tile_m, cp), vmem_limit,
    )(adj, hw2s, d, b2_p)

    return out_p[:n, :c]


# ----------------------------------------------------------------------------
# Pure-JAX reference (f32) and param init
# ----------------------------------------------------------------------------
def node_classifier_reference(x, edge_index, params):
    w1, b1, w2, b2 = params
    n = x.shape[0]
    src, dst = edge_index[0], edge_index[1]
    w = jnp.where(src == dst, 0.0, 1.0).astype(jnp.float32)
    adj = jnp.zeros((n, n), jnp.float32).at[dst, src].add(w)
    adj = adj + jnp.eye(n, dtype=jnp.float32)
    deg = adj.sum(axis=1)
    dis = jnp.where(deg > 0.0, jax.lax.rsqrt(jnp.maximum(deg, 1.0)), 0.0)
    a_hat = adj * dis[:, None] * dis[None, :]
    h = jnp.maximum(a_hat @ (x @ w1) + jnp.reshape(b1, (1, -1)), 0.0)
    z = a_hat @ (h @ w2) + jnp.reshape(b2, (1, -1))
    return jax.nn.log_softmax(z, axis=1)


def init_params(key, num_features, hidden, num_classes):
    k1, k2, k3, k4 = jax.random.split(key, 4)
    lim1 = (6.0 / (num_features + hidden)) ** 0.5
    lim2 = (6.0 / (hidden + num_classes)) ** 0.5
    w1 = jax.random.uniform(k1, (num_features, hidden), jnp.float32, -lim1, lim1)
    b1 = 0.1 * jax.random.normal(k3, (1, hidden), jnp.float32)
    w2 = jax.random.uniform(k2, (hidden, num_classes), jnp.float32, -lim2, lim2)
    b2 = 0.1 * jax.random.normal(k4, (1, num_classes), jnp.float32)
    return w1, b1, w2, b2


if __name__ == "__main__":
    key = jax.random.PRNGKey(0)
    kx, kp, ke = jax.random.split(key, 3)

    num_nodes = 256
    num_features = 128
    hidden = 128
    num_classes = 8
    num_edges = 2048

    x = jax.random.normal(kx, (num_nodes, num_features), jnp.float32)
    edge_index = jax.random.randint(ke, (2, num_edges), 0, num_nodes, jnp.int32)
    params = init_params(kp, num_features, hidden, num_classes)

    ref = node_classifier_reference(x, edge_index, params)

    # Fused single-call path (small graph: int8 A resident in VMEM, one HBM read).
    out_fused = jax.block_until_ready(node_classifier_forward(x, edge_index, params))

    # Row-tiled streaming path (what large graphs use; auto tile -> 128, grid 2).
    try:
        out_tiled = jax.block_until_ready(
            node_classifier_forward(x, edge_index, params, fuse=False))
    except Exception:
        # pl.Buffered(1) resident specs unsupported on this build -> default buffering.
        out_tiled = jax.block_until_ready(
            node_classifier_forward(x, edge_index, params, fuse=False,
                                    single_buffer_residents=False))

    for out in (out_fused, out_tiled):
        assert out.shape == (num_nodes, num_classes)
        row_lse = jax.scipy.special.logsumexp(out, axis=1)
        assert jnp.allclose(row_lse, 0.0, atol=1e-3), row_lse
        max_err = float(jnp.max(jnp.abs(out - ref)))
        mean_err = float(jnp.mean(jnp.abs(out - ref)))
        assert max_err < 1.5e-1 and mean_err < 3e-2, (max_err, mean_err)
    assert float(jnp.max(jnp.abs(out_fused - out_tiled))) < 5e-2

    print("KERNEL_OK")
</pallas_src>

<mosaic_0001>
module attributes {stable_mosaic.version = 11 : i64} {
  func.func @_fused_kernel(%arg0: memref<256x256xi8, #tpu.memory_space<vmem>>, %arg1: memref<256x128xbf16, #tpu.memory_space<vmem>>, %arg2: memref<256x1xf32, #tpu.memory_space<vmem>>, %arg3: memref<128x128xbf16, #tpu.memory_space<vmem>>, %arg4: memref<1x128xf32, #tpu.memory_space<vmem>>, %arg5: memref<128x128xbf16, #tpu.memory_space<vmem>>, %arg6: memref<1x128xf32, #tpu.memory_space<vmem>>, %arg7: memref<256x128xf32, #tpu.memory_space<vmem>>) attributes {dimension_semantics = [], scalar_prefetch = 0 : i64, scratch_operands = 0 : i64, tpu.core_type = #tpu.core_type<tc>} {
    %c0 = arith.constant 0 : index
    %c0_0 = arith.constant 0 : index
    %0 = vector.load %arg0[%c0, %c0_0] : memref<256x256xi8, #tpu.memory_space<vmem>>, vector<256x256xi8>
    %1 = arith.sitofp %0 : vector<256x256xi8> to vector<256x256xbf16>
    %c0_1 = arith.constant 0 : index
    %c0_2 = arith.constant 0 : index
    %2 = vector.load %arg2[%c0_1, %c0_2] : memref<256x1xf32, #tpu.memory_space<vmem>>, vector<256x1xf32>
    %c0_3 = arith.constant 0 : index
    %c0_4 = arith.constant 0 : index
    %3 = vector.load %arg1[%c0_3, %c0_4] : memref<256x128xbf16, #tpu.memory_space<vmem>>, vector<256x128xbf16>
    %c0_5 = arith.constant 0 : index
    %c0_6 = arith.constant 0 : index
    %4 = vector.load %arg3[%c0_5, %c0_6] : memref<128x128xbf16, #tpu.memory_space<vmem>>, vector<128x128xbf16>
    %cst = arith.constant dense<0.000000e+00> : vector<256x128xf32>
    %5 = tpu.matmul %3, %4, %cst {dimension_numbers = #tpu.dot_dimension_numbers<[1], [0], [0], [1], [0, 0, 1, 1], [], []>} : vector<256x128xbf16>, vector<128x128xbf16>, vector<256x128xf32> -> vector<256x128xf32>
    %6 = vector.broadcast %2 : vector<256x1xf32> to vector<256x128xf32>
    %7 = arith.mulf %6, %5 : vector<256x128xf32>
    %8 = arith.truncf %7 : vector<256x128xf32> to vector<256x128xbf16>
    %cst_7 = arith.constant dense<0.000000e+00> : vector<256x128xf32>
    %9 = tpu.matmul %1, %8, %cst_7 {dimension_numbers = #tpu.dot_dimension_numbers<[1], [0], [0], [1], [0, 0, 1, 1], [], []>} : vector<256x256xbf16>, vector<256x128xbf16>, vector<256x128xf32> -> vector<256x128xf32>
    %10 = vector.broadcast %2 : vector<256x1xf32> to vector<256x128xf32>
    %11 = arith.mulf %10, %9 : vector<256x128xf32>
    %c0_8 = arith.constant 0 : index
    %c0_9 = arith.constant 0 : index
    %12 = vector.load %arg4[%c0_8, %c0_9] : memref<1x128xf32, #tpu.memory_space<vmem>>, vector<1x128xf32>
    %13 = vector.broadcast %12 : vector<1x128xf32> to vector<256x128xf32>
    %14 = arith.addf %11, %13 : vector<256x128xf32>
    %cst_10 = arith.constant 0.000000e+00 : f32
    %15 = vector.broadcast %cst_10 : f32 to vector<256x128xf32>
    %16 = arith.maximumf %14, %15 : vector<256x128xf32>
    %17 = arith.truncf %16 : vector<256x128xf32> to vector<256x128xbf16>
    %c0_11 = arith.constant 0 : index
    %c0_12 = arith.constant 0 : index
    %18 = vector.load %arg5[%c0_11, %c0_12] : memref<128x128xbf16, #tpu.memory_space<vmem>>, vector<128x128xbf16>
    %cst_13 = arith.constant dense<0.000000e+00> : vector<256x128xf32>
    %19 = tpu.matmul %17, %18, %cst_13 {dimension_numbers = #tpu.dot_dimension_numbers<[1], [0], [0], [1], [0, 0, 1, 1], [], []>} : vector<256x128xbf16>, vector<128x128xbf16>, vector<256x128xf32> -> vector<256x128xf32>
    %20 = vector.broadcast %2 : vector<256x1xf32> to vector<256x128xf32>
    %21 = arith.mulf %20, %19 : vector<256x128xf32>
    %22 = arith.truncf %21 : vector<256x128xf32> to vector<256x128xbf16>
    %cst_14 = arith.constant dense<0.000000e+00> : vector<256x128xf32>
    %23 = tpu.matmul %1, %22, %cst_14 {dimension_numbers = #tpu.dot_dimension_numbers<[1], [0], [0], [1], [0, 0, 1, 1], [], []>} : vector<256x256xbf16>, vector<256x128xbf16>, vector<256x128xf32> -> vector<256x128xf32>
    %24 = vector.broadcast %2 : vector<256x1xf32> to vector<256x128xf32>
    %25 = arith.mulf %24, %23 : vector<256x128xf32>
    %c0_15 = arith.constant 0 : index
    %c0_16 = arith.constant 0 : index
    %26 = vector.load %arg6[%c0_15, %c0_16] : memref<1x128xf32, #tpu.memory_space<vmem>>, vector<1x128xf32>
    %27 = vector.broadcast %26 : vector<1x128xf32> to vector<256x128xf32>
    %28 = arith.addf %25, %27 : vector<256x128xf32>
    %cst_17 = arith.constant dense<0xFF800000> : vector<256xf32>
    %29 = vector.multi_reduction <maximumf>, %28, %cst_17 [1] : vector<256x128xf32> to vector<256xf32>
    %30 = vector.shape_cast %29 : vector<256xf32> to vector<256x1xf32>
    %31 = vector.broadcast %30 : vector<256x1xf32> to vector<256x128xf32>
    %32 = arith.subf %28, %31 : vector<256x128xf32>
    %33 = math.exp %32 : vector<256x128xf32>
    %cst_18 = arith.constant dense<0.000000e+00> : vector<256xf32>
    %34 = vector.multi_reduction <add>, %33, %cst_18 [1] : vector<256x128xf32> to vector<256xf32>
    %35 = vector.shape_cast %34 : vector<256xf32> to vector<256x1xf32>
    %36 = math.log %35 : vector<256x1xf32>
    %37 = vector.broadcast %36 : vector<256x1xf32> to vector<256x128xf32>
    %38 = arith.subf %32, %37 : vector<256x128xf32>
    %c0_19 = arith.constant 0 : index
    %c0_20 = arith.constant 0 : index
    %39 = vector.load %arg7[%c0_19, %c0_20] : memref<256x128xf32, #tpu.memory_space<vmem>>, vector<256x128xf32>
    tpu.vector_store %arg7[%c0_19, %c0_20], %38 {strides = array<i32>} : memref<256x128xf32, #tpu.memory_space<vmem>>, vector<256x128xf32>,
    return
  }
}

</mosaic_0001>

<llo_original>
// kernel: tpu_custom_call.1
$region0: #{tpu_custom_call.1}
  #allocation0 [shape = 'u32[]', space=smem, size = 0x4, offset = 0x4, fixed_abs, tag = 'smem constant byte address 0x4 - core index']
  #allocation1 [shape = 'u32[144,128]{1,0:T(1,128)}', space=vmem, size = 0x12000, scoped, tag = 'internal scratch']
  %s0 = inlined_call_operand.vmem [shape: s8[256,256], index: 0, kind: input, shape index: {}]
  %s1 = inlined_call_operand.vmem [shape: bf16[256,128], index: 1, kind: input, shape index: {}]
  %s2 = inlined_call_operand.vmem [shape: f32[256,1], index: 2, kind: input, shape index: {}]
  %s3 = inlined_call_operand.hbm [shape: bf16[128,128], index: 3, kind: input, shape index: {}]
  %s4 = inlined_call_operand.vmem [shape: f32[1,128], index: 4, kind: input, shape index: {}]
  %s5 = inlined_call_operand.hbm [shape: bf16[128,128], index: 5, kind: input, shape index: {}]
  %s6 = inlined_call_operand.vmem [shape: f32[1,128], index: 6, kind: input, shape index: {}]
  %s7 = inlined_call_operand.hbm [shape: f32[256,128], index: 7, kind: output, shape index: {}]
  %s8 = sld [smem:[#allocation0]]
  $region46: #{tpu_custom_call.1} parent=0
    _
  %s10 = ssub.s32 1, %s8
  %s11 = scalar_select 0, %s10, %s8
  $region1: #{tpu_custom_call.1} parent=0
    #allocation2 [shape = 'u8[32768]{0}', space=vmem, size = 0x8000, scoped, tag = 'input window, operand 3, single buffered']
    #allocation3 [shape = 's32[1]{0}', space=sflag, size = 0x4, scoped, tag = 'scoped memory for tpu_custom_call.1']
    #allocation4 [shape = 's32[1]{0}', space=sflag, size = 0x4, scoped, tag = 'scoped memory for tpu_custom_call.1']
    #allocation5 [shape = 'u8[32768]{0}', space=vmem, size = 0x8000, scoped, tag = 'input window, operand 5, single buffered']
    #allocation6 [shape = 's32[1]{0}', space=sflag, size = 0x4, scoped, tag = 'scoped memory for tpu_custom_call.1']
    #allocation7 [shape = 'u8[131072]{0}', space=vmem, size = 0x20000, scoped, tag = 'output window, operand 0, single buffered']
    %12 = vsyncpa [#allocation3], 0
    %13 = vsyncpa [#allocation6], 0
    %14 = vsyncpa [#allocation4], 0
    // Predicated region
    $region2: #{tpu_custom_call.1} parent=1 // pred_check
      _
    $region3: #{tpu_custom_call.1} parent=1 // pred_check_branch
      %16 = sbr.rel (0) target = $region5
    $region4: #{tpu_custom_call.1} parent=1 // pred_region
      _
    $region5: #{tpu_custom_call.1} parent=1 // pred_fallthru
      _
    // Predicated region
    $region6: #{tpu_custom_call.1} parent=1 // pred_check
      _
    $region7: #{tpu_custom_call.1} parent=1 // pred_check_branch
      %18 = sbr.rel (0) target = $region9
    $region8: #{tpu_custom_call.1} parent=1 // pred_region
      _
    $region9: #{tpu_custom_call.1} parent=1 // pred_fallthru
      _
    // Predicated region
    $region10: #{tpu_custom_call.1} parent=1 // pred_check
      _
    $region11: #{tpu_custom_call.1} parent=1 // pred_check_branch
      %20 = sbr.rel (0) target = $region13
    $region12: #{tpu_custom_call.1} parent=1 // pred_region
      _
    $region13: #{tpu_custom_call.1} parent=1 // pred_fallthru
      _
    // Predicated region
    $region14: #{tpu_custom_call.1} parent=1 // pred_check
      _
    $region15: #{tpu_custom_call.1} parent=1 // pred_check_branch
      %22 = sbr.rel (0) target = $region17
    $region16: #{tpu_custom_call.1} parent=1 // pred_region
      %s24 = ssub.s32 1024, 1024
      %25 = vsyncadd [#allocation3], %s24
      %s26 = sshll.u32 [#allocation2], 4
      %s27 = int_to_ptr.vmem [resolvable:$true] %s26
      %32 = dma.hbm_to_vmem [thread:$0]  %s3, 1024, %s27, [#allocation3], 64, 64, 4
    $region17: #{tpu_custom_call.1} parent=1 // pred_fallthru
      _
    // Predicated region
    $region18: #{tpu_custom_call.1} parent=1 // pred_check
      _
    $region19: #{tpu_custom_call.1} parent=1 // pred_check_branch
      %34 = sbr.rel (0) target = $region21
    $region20: #{tpu_custom_call.1} parent=1 // pred_region
      _
    $region21: #{tpu_custom_call.1} parent=1 // pred_fallthru
      _
    // Predicated region
    $region22: #{tpu_custom_call.1} parent=1 // pred_check
      _
    $region23: #{tpu_custom_call.1} parent=1 // pred_check_branch
      %36 = sbr.rel (0) target = $region25
    $region24: #{tpu_custom_call.1} parent=1 // pred_region
      %s38 = ssub.s32 1024, 1024
      %39 = vsyncadd [#allocation6], %s38
      %s40 = sshll.u32 [#allocation5], 4
      %s41 = int_to_ptr.vmem [resolvable:$true] %s40
      %46 = dma.hbm_to_vmem [thread:$0]  %s5, 1024, %s41, [#allocation6], 64, 64, 4
    $region25: #{tpu_custom_call.1} parent=1 // pred_fallthru
      _
    // Predicated region
    $region26: #{tpu_custom_call.1} parent=1 // pred_check
      _
    $region27: #{tpu_custom_call.1} parent=1 // pred_check_branch
      %48 = sbr.rel (0) target = $region29
    $region28: #{tpu_custom_call.1} parent=1 // pred_region
      _
    $region29: #{tpu_custom_call.1} parent=1 // pred_fallthru
      _
    // Predicated region
    $region30: #{tpu_custom_call.1} parent=1 // pred_check
      _
    $region31: #{tpu_custom_call.1} parent=1 // pred_check_branch
      %50 = sbr.rel (0) target = $region33
    $region32: #{tpu_custom_call.1} parent=1 // pred_region
      %51 = dma.done [#allocation3], 1024
    $region33: #{tpu_custom_call.1} parent=1 // pred_fallthru
      _
    // Predicated region
    $region34: #{tpu_custom_call.1} parent=1 // pred_check
      _
    $region35: #{tpu_custom_call.1} parent=1 // pred_check_branch
      %53 = sbr.rel (0) target = $region37
    $region36: #{tpu_custom_call.1} parent=1 // pred_region
      %54 = dma.done [#allocation6], 1024
    $region37: #{tpu_custom_call.1} parent=1 // pred_fallthru
      _
    %v56 = vld [vmem:[%s0] sm:$0xff]
    %v57 = vld [vmem:[%s0 + $0x8] sm:$0xff]
    %v58 = vld [vmem:[%s0 + $0x10] sm:$0xff]
    %v59 = vld [vmem:[%s0 + $0x18] sm:$0xff]
    %v60 = vld [vmem:[%s0 + $0x20] sm:$0xff]
    %v61 = vld [vmem:[%s0 + $0x28] sm:$0xff]
    %v62 = vld [vmem:[%s0 + $0x30] sm:$0xff]
    %v63 = vld [vmem:[%s0 + $0x38] sm:$0xff]
    %v64 = vld [vmem:[%s0 + $0x40] sm:$0xff]
    %v65 = vld [vmem:[%s0 + $0x48] sm:$0xff]
    %v66 = vld [vmem:[%s0 + $0x50] sm:$0xff]
    %v67 = vld [vmem:[%s0 + $0x58] sm:$0xff]
    %v68 = vld [vmem:[%s0 + $0x60] sm:$0xff]
    %v69 = vld [vmem:[%s0 + $0x68] sm:$0xff]
    %v70 = vld [vmem:[%s0 + $0x70] sm:$0xff]
    %v71 = vld [vmem:[%s0 + $0x78] sm:$0xff]
    %v72 = vunpack.c.l.s8.bf16 %v56
    %v73 = vunpack.c.l.s8.bf16 %v57
    %v74 = vunpack.c.h.s8.bf16 %v56
    %v75 = vunpack.c.h.s8.bf16 %v57
    %v76 = vunpack.c.l.s8.bf16 %v58
    %v77 = vunpack.c.l.s8.bf16 %v59
    %v78 = vunpack.c.h.s8.bf16 %v58
    %v79 = vunpack.c.h.s8.bf16 %v59
    %v80 = vunpack.c.l.s8.bf16 %v60
    %v81 = vunpack.c.l.s8.bf16 %v61
    %v82 = vunpack.c.h.s8.bf16 %v60
    %v83 = vunpack.c.h.s8.bf16 %v61
    %v84 = vunpack.c.l.s8.bf16 %v62
    %v85 = vunpack.c.l.s8.bf16 %v63
    %v86 = vunpack.c.h.s8.bf16 %v62
    %v87 = vunpack.c.h.s8.bf16 %v63
    %v88 = vunpack.c.l.s8.bf16 %v64
    %v89 = vunpack.c.l.s8.bf16 %v65
    %v90 = vunpack.c.h.s8.bf16 %v64
    %v91 = vunpack.c.h.s8.bf16 %v65
    %v92 = vunpack.c.l.s8.bf16 %v66
    %v93 = vunpack.c.l.s8.bf16 %v67
    %v94 = vunpack.c.h.s8.bf16 %v66
    %v95 = vunpack.c.h.s8.bf16 %v67
    %v96 = vunpack.c.l.s8.bf16 %v68
    %v97 = vunpack.c.l.s8.bf16 %v69
    %v98 = vunpack.c.h.s8.bf16 %v68
    %v99 = vunpack.c.h.s8.bf16 %v69
    %v100 = vunpack.c.l.s8.bf16 %v70
    %v101 = vunpack.c.l.s8.bf16 %v71
    %v102 = vunpack.c.h.s8.bf16 %v70
    %v103 = vunpack.c.h.s8.bf16 %v71
    %v104 = vld [vmem:[%s2] sm:$0xff]
    %v105 = vld [vmem:[%s2 + $0x8] sm:$0xff]
    %v106 = vld [vmem:[%s2 + $0x10] sm:$0xff]
    %v107 = vld [vmem:[%s2 + $0x18] sm:$0xff]
    %v108 = vld [vmem:[%s2 + $0x20] sm:$0xff]
    %v109 = vld [vmem:[%s2 + $0x28] sm:$0xff]
    %v110 = vld [vmem:[%s2 + $0x30] sm:$0xff]
    %v111 = vld [vmem:[%s2 + $0x38] sm:$0xff]
    %v112 = vld [vmem:[%s2 + $0x40] sm:$0xff]
    %v113 = vld [vmem:[%s2 + $0x48] sm:$0xff]
    %v114 = vld [vmem:[%s2 + $0x50] sm:$0xff]
    %v115 = vld [vmem:[%s2 + $0x58] sm:$0xff]
    %v116 = vld [vmem:[%s2 + $0x60] sm:$0xff]
    %v117 = vld [vmem:[%s2 + $0x68] sm:$0xff]
    %v118 = vld [vmem:[%s2 + $0x70] sm:$0xff]
    %v119 = vld [vmem:[%s2 + $0x78] sm:$0xff]
    %v120 = vld [vmem:[%s2 + $0x80] sm:$0xff]
    %v121 = vld [vmem:[%s2 + $0x88] sm:$0xff]
    %v122 = vld [vmem:[%s2 + $0x90] sm:$0xff]
    %v123 = vld [vmem:[%s2 + $0x98] sm:$0xff]
    %v124 = vld [vmem:[%s2 + $0xa0] sm:$0xff]
    %v125 = vld [vmem:[%s2 + $0xa8] sm:$0xff]
    %v126 = vld [vmem:[%s2 + $0xb0] sm:$0xff]
    %v127 = vld [vmem:[%s2 + $0xb8] sm:$0xff]
    %v128 = vld [vmem:[%s2 + $0xc0] sm:$0xff]
    %v129 = vld [vmem:[%s2 + $0xc8] sm:$0xff]
    %v130 = vld [vmem:[%s2 + $0xd0] sm:$0xff]
    %v131 = vld [vmem:[%s2 + $0xd8] sm:$0xff]
    %v132 = vld [vmem:[%s2 + $0xe0] sm:$0xff]
    %v133 = vld [vmem:[%s2 + $0xe8] sm:$0xff]
    %v134 = vld [vmem:[%s2 + $0xf0] sm:$0xff]
    %v135 = vld [vmem:[%s2 + $0xf8] sm:$0xff]
    %v136 = vld [vmem:[%s1] sm:$0xf]
    %v137 = vld [vmem:[%s1 + $0x4] sm:$0xf]
    %v138 = vld [vmem:[%s1 + $0x8] sm:$0xf]
    %v139 = vld [vmem:[%s1 + $0xc] sm:$0xf]
    %v140 = vld [vmem:[%s1 + $0x10] sm:$0xf]
    %v141 = vld [vmem:[%s1 + $0x14] sm:$0xf]
    %v142 = vld [vmem:[%s1 + $0x18] sm:$0xf]
    %v143 = vld [vmem:[%s1 + $0x1c] sm:$0xf]
    %v144 = vld [vmem:[%s1 + $0x20] sm:$0xf]
    %v145 = vld [vmem:[%s1 + $0x24] sm:$0xf]
    %v146 = vld [vmem:[%s1 + $0x28] sm:$0xf]
    %v147 = vld [vmem:[%s1 + $0x2c] sm:$0xf]
    %v148 = vld [vmem:[%s1 + $0x30] sm:$0xf]
    %v149 = vld [vmem:[%s1 + $0x34] sm:$0xf]
    %v150 = vld [vmem:[%s1 + $0x38] sm:$0xf]
    %v151 = vld [vmem:[%s1 + $0x3c] sm:$0xf]
    %v152 = vld [vmem:[%s1 + $0x40] sm:$0xf]
    %v153 = vld [vmem:[%s1 + $0x44] sm:$0xf]
    %v154 = vld [vmem:[%s1 + $0x48] sm:$0xf]
    %v155 = vld [vmem:[%s1 + $0x4c] sm:$0xf]
    %v156 = vld [vmem:[%s1 + $0x50] sm:$0xf]
    %v157 = vld [vmem:[%s1 + $0x54] sm:$0xf]
    %v158 = vld [vmem:[%s1 + $0x58] sm:$0xf]
    %v159 = vld [vmem:[%s1 + $0x5c] sm:$0xf]
    %v160 = vld [vmem:[%s1 + $0x60] sm:$0xf]
    %v161 = vld [vmem:[%s1 + $0x64] sm:$0xf]
    %v162 = vld [vmem:[%s1 + $0x68] sm:$0xf]
    %v163 = vld [vmem:[%s1 + $0x6c] sm:$0xf]
    %v164 = vld [vmem:[%s1 + $0x70] sm:$0xf]
    %v165 = vld [vmem:[%s1 + $0x74] sm:$0xf]
    %v166 = vld [vmem:[%s1 + $0x78] sm:$0xf]
    %v167 = vld [vmem:[%s1 + $0x7c] sm:$0xf]
    %v168 = vld [vmem:[#allocation2] sm:$0xf]
    %v169 = vld [vmem:[#allocation2 + $0x4] sm:$0xf]
    %v170 = vld [vmem:[#allocation2 + $0x8] sm:$0xf]
    %v171 = vld [vmem:[#allocation2 + $0xc] sm:$0xf]
    %v172 = vld [vmem:[#allocation2 + $0x10] sm:$0xf]
    %v173 = vld [vmem:[#allocation2 + $0x14] sm:$0xf]
    %v174 = vld [vmem:[#allocation2 + $0x18] sm:$0xf]
    %v175 = vld [vmem:[#allocation2 + $0x1c] sm:$0xf]
    %v176 = vld [vmem:[#allocation2 + $0x20] sm:$0xf]
    %v177 = vld [vmem:[#allocation2 + $0x24] sm:$0xf]
    %v178 = vld [vmem:[#allocation2 + $0x28] sm:$0xf]
    %v179 = vld [vmem:[#allocation2 + $0x2c] sm:$0xf]
    %v180 = vld [vmem:[#allocation2 + $0x30] sm:$0xf]
    %v181 = vld [vmem:[#allocation2 + $0x34] sm:$0xf]
    %v182 = vld [vmem:[#allocation2 + $0x38] sm:$0xf]
    %v183 = vld [vmem:[#allocation2 + $0x3c] sm:$0xf]
    %v216 = vunpack.c.l.b16 %v136
    %v217 = vunpack.c.l.b16 %v137
    %v218 = vunpack.c.l.b16 %v138
    %v219 = vunpack.c.l.b16 %v139
    %v220 = vunpack.c.l.b16 %v140
    %v221 = vunpack.c.l.b16 %v141
    %v222 = vunpack.c.l.b16 %v142
    %v223 = vunpack.c.l.b16 %v143
    %v224 = vunpack.c.l.b16 %v144
    %v225 = vunpack.c.l.b16 %v145
    %v226 = vunpack.c.l.b16 %v146
    %v227 = vunpack.c.l.b16 %v147
    %v228 = vunpack.c.l.b16 %v148
    %v229 = vunpack.c.l.b16 %v149
    %v230 = vunpack.c.l.b16 %v150
    %v231 = vunpack.c.l.b16 %v151
    %v232 = vunpack.c.l.b16 %v152
    %v233 = vunpack.c.l.b16 %v153
    %v234 = vunpack.c.l.b16 %v154
    %v235 = vunpack.c.l.b16 %v155
    %v236 = vunpack.c.l.b16 %v156
    %v237 = vunpack.c.l.b16 %v157
    %v238 = vunpack.c.l.b16 %v158
    %v239 = vunpack.c.l.b16 %v159
    %v240 = vunpack.c.l.b16 %v160
    %v241 = vunpack.c.l.b16 %v161
    %v242 = vunpack.c.l.b16 %v162
    %v243 = vunpack.c.l.b16 %v163
    %v244 = vunpack.c.l.b16 %v164
    %v245 = vunpack.c.l.b16 %v165
    %v246 = vunpack.c.l.b16 %v166
    %v247 = vunpack.c.l.b16 %v167
    %v248 = vpack.c.b16 %v217, %v216
    %v249 = vpack.c.b16 %v219, %v218
    %v250 = vpack.c.b16 %v221, %v220
    %v251 = vpack.c.b16 %v223, %v222
    %v252 = vpack.c.b16 %v225, %v224
    %v253 = vpack.c.b16 %v227, %v226
    %v254 = vpack.c.b16 %v229, %v228
    %v255 = vpack.c.b16 %v231, %v230
    %v256 = vpack.c.b16 %v233, %v232
    %v257 = vpack.c.b16 %v235, %v234
    %v258 = vpack.c.b16 %v237, %v236
    %v259 = vpack.c.b16 %v239, %v238
    %v260 = vpack.c.b16 %v241, %v240
    %v261 = vpack.c.b16 %v243, %v242
    %v262 = vpack.c.b16 %v245, %v244
    %v263 = vpack.c.b16 %v247, %v246
    %v296 = vunpack.c.l.b16 %v168
    %v297 = vunpack.c.l.b16 %v169
    %v298 = vunpack.c.l.b16 %v170
    %v299 = vunpack.c.l.b16 %v171
    %v300 = vunpack.c.l.b16 %v172
    %v301 = vunpack.c.l.b16 %v173
    %v302 = vunpack.c.l.b16 %v174
    %v303 = vunpack.c.l.b16 %v175
    %v304 = vunpack.c.l.b16 %v176
    %v305 = vunpack.c.l.b16 %v177
    %v306 = vunpack.c.l.b16 %v178
    %v307 = vunpack.c.l.b16 %v179
    %v308 = vunpack.c.l.b16 %v180
    %v309 = vunpack.c.l.b16 %v181
    %v310 = vunpack.c.l.b16 %v182
    %v311 = vunpack.c.l.b16 %v183
    %v312 = vpack.c.b16 %v297, %v296
    %v313 = vpack.c.b16 %v299, %v298
    %v314 = vpack.c.b16 %v301, %v300
    %v315 = vpack.c.b16 %v303, %v302
    %v316 = vpack.c.b16 %v305, %v304
    %v317 = vpack.c.b16 %v307, %v306
    %v318 = vpack.c.b16 %v309, %v308
    %v319 = vpack.c.b16 %v311, %v310
    %328 = vmatprep.subr.bf16.mxu0 0
    %329 = vmatpush1.bf16.msra.mxu0 %v312
    %330 = vmatprep.subr.bf16.mxu0 0
    %331 = vmatpush1.bf16.msra.mxu0 %v313
    %332 = vmatprep.subr.bf16.mxu0 0
    %333 = vmatpush1.bf16.msra.mxu0 %v314
    %334 = vmatprep.subr.bf16.mxu0 0
    %335 = vmatpush1.bf16.msra.mxu0 %v315
    %336 = vmatprep.subr.bf16.mxu0 0
    %337 = vmatpush1.bf16.msra.mxu0 %v316
    %338 = vmatprep.subr.bf16.mxu0 0
    %339 = vmatpush1.bf16.msra.mxu0 %v317
    %340 = vmatprep.subr.bf16.mxu0 0
    %341 = vmatpush1.bf16.msra.mxu0 %v318
    %342 = vmatprep.subr.bf16.mxu0 0
    %343 = vmatpush1.bf16.msra.mxu0 %v319
    %344 = vmatprep.subr.bf16.mxu0 0
    %345 = vmatpush1.bf16.msra.mxu0 0
    %346 = vmatprep.subr.bf16.mxu0 0
    %347 = vmatpush1.bf16.msra.mxu0 0
    %348 = vmatprep.subr.bf16.mxu0 0
    %349 = vmatpush1.bf16.msra.mxu0 0
    %350 = vmatprep.subr.bf16.mxu0 0
    %351 = vmatpush1.bf16.msra.mxu0 0
    %352 = vmatprep.subr.bf16.mxu0 0
    %353 = vmatpush1.bf16.msra.mxu0 0
    %354 = vmatprep.subr.bf16.mxu0 0
    %355 = vmatpush1.bf16.msra.mxu0 0
    %356 = vmatprep.subr.bf16.mxu0 0
    %357 = vmatpush1.bf16.msra.mxu0 0
    %358 = vmatprep.subr.bf16.mxu0 0
    %359 = vmatpush1.bf16.msra.mxu0 0
    %360 = vmatprep.mubr.bf16.mxu0 0
    %361 = vmatmul.mubr.bf16.gmra.mrb[0].mxu0 %v248
    %v362 = vpop.f32.mrb[0].mxu0
    %v363 = vadd.f32 0.0, %v362
    %v364 = vpop.f32.mrb[0].mxu0
    %v365 = vpop.f32.mrb[0].mxu0
    %v366 = vadd.f32 0.0, %v365
    %v367 = vpop.f32.mrb[0].mxu0
    %368 = vmatprep.mubr.bf16.mxu0 0
    %369 = vmatmul.mubr.bf16.gmra.mrb[0].mxu0 %v249
    %v370 = vpop.f32.mrb[0].mxu0
    %v371 = vadd.f32 0.0, %v370
    %v372 = vpop.f32.mrb[0].mxu0
    %v373 = vpop.f32.mrb[0].mxu0
    %v374 = vadd.f32 0.0, %v373
    %v375 = vpop.f32.mrb[0].mxu0
    %376 = vmatprep.mubr.bf16.mxu0 0
    %377 = vmatmul.mubr.bf16.gmra.mrb[0].mxu0 %v250
    %v378 = vpop.f32.mrb[0].mxu0
    %v379 = vadd.f32 0.0, %v378
    %v380 = vpop.f32.mrb[0].mxu0
    %v381 = vpop.f32.mrb[0].mxu0
    %v382 = vadd.f32 0.0, %v381
    %v383 = vpop.f32.mrb[0].mxu0
    %384 = vmatprep.mubr.bf16.mxu0 0
    %385 = vmatmul.mubr.bf16.gmra.mrb[0].mxu0 %v251
    %v386 = vpop.f32.mrb[0].mxu0
    %v387 = vadd.f32 0.0, %v386
    %v388 = vpop.f32.mrb[0].mxu0
    %v389 = vpop.f32.mrb[0].mxu0
    %v390 = vadd.f32 0.0, %v389
    %v391 = vpop.f32.mrb[0].mxu0
    %392 = vmatprep.mubr.bf16.mxu0 0
    %393 = vmatmul.mubr.bf16.gmra.mrb[0].mxu0 %v252
    %v394 = vpop.f32.mrb[0].mxu0
    %v395 = vadd.f32 0.0, %v394
    %v396 = vpop.f32.mrb[0].mxu0
    %v397 = vpop.f32.mrb[0].mxu0
    %v398 = vadd.f32 0.0, %v397
    %v399 = vpop.f32.mrb[0].mxu0
    %400 = vmatprep.mubr.bf16.mxu0 0
    %401 = vmatmul.mubr.bf16.gmra.mrb[0].mxu0 %v253
    %v402 = vpop.f32.mrb[0].mxu0
    %v403 = vadd.f32 0.0, %v402
    %v404 = vpop.f32.mrb[0].mxu0
    %v405 = vpop.f32.mrb[0].mxu0
    %v406 = vadd.f32 0.0, %v405
    %v407 = vpop.f32.mrb[0].mxu0
    %408 = vmatprep.mubr.bf16.mxu0 0
    %409 = vmatmul.mubr.bf16.gmra.mrb[0].mxu0 %v254
    %v410 = vpop.f32.mrb[0].mxu0
    %v411 = vadd.f32 0.0, %v410
    %v412 = vpop.f32.mrb[0].mxu0
    %v413 = vpop.f32.mrb[0].mxu0
    %v414 = vadd.f32 0.0, %v413
    %v415 = vpop.f32.mrb[0].mxu0
    %416 = vmatprep.mubr.bf16.mxu0 0
    %417 = vmatmul.mubr.bf16.gmra.mrb[0].mxu0 %v255
    %v418 = vpop.f32.mrb[0].mxu0
    %v419 = vadd.f32 0.0, %v418
    %v420 = vpop.f32.mrb[0].mxu0
    %v421 = vpop.f32.mrb[0].mxu0
    %v422 = vadd.f32 0.0, %v421
    %v423 = vpop.f32.mrb[0].mxu0
    %424 = vmatprep.mubr.bf16.mxu0 0
    %425 = vmatmul.mubr.bf16.gmra.mrb[0].mxu0 %v256
    %v426 = vpop.f32.mrb[0].mxu0
    %v427 = vadd.f32 0.0, %v426
    %v428 = vpop.f32.mrb[0].mxu0
    %v429 = vpop.f32.mrb[0].mxu0
    %v430 = vadd.f32 0.0, %v429
    %v431 = vpop.f32.mrb[0].mxu0
    %432 = vmatprep.mubr.bf16.mxu0 0
    %433 = vmatmul.mubr.bf16.gmra.mrb[0].mxu0 %v257
    %v434 = vpop.f32.mrb[0].mxu0
    %v435 = vadd.f32 0.0, %v434
    %v436 = vpop.f32.mrb[0].mxu0
    %v437 = vpop.f32.mrb[0].mxu0
    %v438 = vadd.f32 0.0, %v437
    %v439 = vpop.f32.mrb[0].mxu0
    %440 = vmatprep.mubr.bf16.mxu0 0
    %441 = vmatmul.mubr.bf16.gmra.mrb[0].mxu0 %v258
    %v442 = vpop.f32.mrb[0].mxu0
    %v443 = vadd.f32 0.0, %v442
    %v444 = vpop.f32.mrb[0].mxu0
    %v445 = vpop.f32.mrb[0].mxu0
    %v446 = vadd.f32 0.0, %v445
    %v447 = vpop.f32.mrb[0].mxu0
    %448 = vmatprep.mubr.bf16.mxu0 0
    %449 = vmatmul.mubr.bf16.gmra.mrb[0].mxu0 %v259
    %v450 = vpop.f32.mrb[0].mxu0
    %v451 = vadd.f32 0.0, %v450
    %v452 = vpop.f32.mrb[0].mxu0
    %v453 = vpop.f32.mrb[0].mxu0
    %v454 = vadd.f32 0.0, %v453
    %v455 = vpop.f32.mrb[0].mxu0
    %456 = vmatprep.mubr.bf16.mxu0 0
    %457 = vmatmul.mubr.bf16.gmra.mrb[0].mxu0 %v260
    %v458 = vpop.f32.mrb[0].mxu0
    %v459 = vadd.f32 0.0, %v458
    %v460 = vpop.f32.mrb[0].mxu0
    %v461 = vpop.f32.mrb[0].mxu0
    %v462 = vadd.f32 0.0, %v461
    %v463 = vpop.f32.mrb[0].mxu0
    %464 = vmatprep.mubr.bf16.mxu0 0
    %465 = vmatmul.mubr.bf16.gmra.mrb[0].mxu0 %v261
    %v466 = vpop.f32.mrb[0].mxu0
    %v467 = vadd.f32 0.0, %v466
    %v468 = vpop.f32.mrb[0].mxu0
    %v469 = vpop.f32.mrb[0].mxu0
    %v470 = vadd.f32 0.0, %v469
    %v471 = vpop.f32.mrb[0].mxu0
    %472 = vmatprep.mubr.bf16.mxu0 0
    %473 = vmatmul.mubr.bf16.gmra.mrb[0].mxu0 %v262
    %v474 = vpop.f32.mrb[0].mxu0
    %v475 = vadd.f32 0.0, %v474
    %v476 = vpop.f32.mrb[0].mxu0
    %v477 = vpop.f32.mrb[0].mxu0
    %v478 = vadd.f32 0.0, %v477
    %v479 = vpop.f32.mrb[0].mxu0
    %480 = vmatprep.mubr.bf16.mxu0 0
    %481 = vmatmul.mubr.bf16.gmra.mrb[0].mxu0 %v263
    %v482 = vpop.f32.mrb[0].mxu0
    %v483 = vadd.f32 0.0, %v482
    %v484 = vpop.f32.mrb[0].mxu0
    %v485 = vpop.f32.mrb[0].mxu0
    %v486 = vadd.f32 0.0, %v485
    %v487 = vpop.f32.mrb[0].mxu0
    %488 = vdwg.mxu0
    %490 = vset.pattern.permute.xlu0 0
    %491 = vperm.xlu0 %490, %v104
    %v492 = vpop.permute.xlu0 %491
    %495 = vset.pattern.permute.xlu0 0
    %496 = vperm.xlu0 %495, %v105
    %v497 = vpop.permute.xlu0 %496
    %500 = vset.pattern.permute.xlu0 0
    %501 = vperm.xlu0 %500, %v106
    %v502 = vpop.permute.xlu0 %501
    %505 = vset.pattern.permute.xlu0 0
    %506 = vperm.xlu0 %505, %v107
    %v507 = vpop.permute.xlu0 %506
    %510 = vset.pattern.permute.xlu0 0
    %511 = vperm.xlu0 %510, %v108
    %v512 = vpop.permute.xlu0 %511
    %515 = vset.pattern.permute.xlu0 0
    %516 = vperm.xlu0 %515, %v109
    %v517 = vpop.permute.xlu0 %516
    %520 = vset.pattern.permute.xlu0 0
    %521 = vperm.xlu0 %520, %v110
    %v522 = vpop.permute.xlu0 %521
    %525 = vset.pattern.permute.xlu0 0
    %526 = vperm.xlu0 %525, %v111
    %v527 = vpop.permute.xlu0 %526
    %530 = vset.pattern.permute.xlu0 0
    %531 = vperm.xlu0 %530, %v112
    %v532 = vpop.permute.xlu0 %531
    %535 = vset.pattern.permute.xlu0 0
    %536 = vperm.xlu0 %535, %v113
    %v537 = vpop.permute.xlu0 %536
    %540 = vset.pattern.permute.xlu0 0
    %541 = vperm.xlu0 %540, %v114
    %v542 = vpop.permute.xlu0 %541
    %545 = vset.pattern.permute.xlu0 0
    %546 = vperm.xlu0 %545, %v115
    %v547 = vpop.permute.xlu0 %546
    %550 = vset.pattern.permute.xlu0 0
    %551 = vperm.xlu0 %550, %v116
    %v552 = vpop.permute.xlu0 %551
    %555 = vset.pattern.permute.xlu0 0
    %556 = vperm.xlu0 %555, %v117
    %v557 = vpop.permute.xlu0 %556
    %560 = vset.pattern.permute.xlu0 0
    %561 = vperm.xlu0 %560, %v118
    %v562 = vpop.permute.xlu0 %561
    %565 = vset.pattern.permute.xlu0 0
    %566 = vperm.xlu0 %565, %v119
    %v567 = vpop.permute.xlu0 %566
    %570 = vset.pattern.permute.xlu0 0
    %571 = vperm.xlu0 %570, %v120
    %v572 = vpop.permute.xlu0 %571
    %575 = vset.pattern.permute.xlu0 0
    %576 = vperm.xlu0 %575, %v121
    %v577 = vpop.permute.xlu0 %576
    %580 = vset.pattern.permute.xlu0 0
    %581 = vperm.xlu0 %580, %v122
    %v582 = vpop.permute.xlu0 %581
    %585 = vset.pattern.permute.xlu0 0
    %586 = vperm.xlu0 %585, %v123
    %v587 = vpop.permute.xlu0 %586
    %590 = vset.pattern.permute.xlu0 0
    %591 = vperm.xlu0 %590, %v124
    %v592 = vpop.permute.xlu0 %591
    %595 = vset.pattern.permute.xlu0 0
    %596 = vperm.xlu0 %595, %v125
    %v597 = vpop.permute.xlu0 %596
    %600 = vset.pattern.permute.xlu0 0
    %601 = vperm.xlu0 %600, %v126
    %v602 = vpop.permute.xlu0 %601
    %605 = vset.pattern.permute.xlu0 0
    %606 = vperm.xlu0 %605, %v127
    %v607 = vpop.permute.xlu0 %606
    %610 = vset.pattern.permute.xlu0 0
    %611 = vperm.xlu0 %610, %v128
    %v612 = vpop.permute.xlu0 %611
    %615 = vset.pattern.permute.xlu0 0
    %616 = vperm.xlu0 %615, %v129
    %v617 = vpop.permute.xlu0 %616
    %620 = vset.pattern.permute.xlu0 0
    %621 = vperm.xlu0 %620, %v130
    %v622 = vpop.permute.xlu0 %621
    %625 = vset.pattern.permute.xlu0 0
    %626 = vperm.xlu0 %625, %v131
    %v627 = vpop.permute.xlu0 %626
    %630 = vset.pattern.permute.xlu0 0
    %631 = vperm.xlu0 %630, %v132
    %v632 = vpop.permute.xlu0 %631
    %635 = vset.pattern.permute.xlu0 0
    %636 = vperm.xlu0 %635, %v133
    %v637 = vpop.permute.xlu0 %636
    %640 = vset.pattern.permute.xlu0 0
    %641 = vperm.xlu0 %640, %v134
    %v642 = vpop.permute.xlu0 %641
    %645 = vset.pattern.permute.xlu0 0
    %646 = vperm.xlu0 %645, %v135
    %v647 = vpop.permute.xlu0 %646
    %v649 = vmul.f32 %v492, %v363
    %v650 = vmul.f32 %v497, %v366
    %v651 = vmul.f32 %v502, %v371
    %v652 = vmul.f32 %v507, %v374
    %v653 = vmul.f32 %v512, %v379
    %v654 = vmul.f32 %v517, %v382
    %v655 = vmul.f32 %v522, %v387
    %v656 = vmul.f32 %v527, %v390
    %v657 = vmul.f32 %v532, %v395
    %v658 = vmul.f32 %v537, %v398
    %v659 = vmul.f32 %v542, %v403
    %v660 = vmul.f32 %v547, %v406
    %v661 = vmul.f32 %v552, %v411
    %v662 = vmul.f32 %v557, %v414
    %v663 = vmul.f32 %v562, %v419
    %v664 = vmul.f32 %v567, %v422
    %v665 = vmul.f32 %v572, %v427
    %v666 = vmul.f32 %v577, %v430
    %v667 = vmul.f32 %v582, %v435
    %v668 = vmul.f32 %v587, %v438
    %v669 = vmul.f32 %v592, %v443
    %v670 = vmul.f32 %v597, %v446
    %v671 = vmul.f32 %v602, %v451
    %v672 = vmul.f32 %v607, %v454
    %v673 = vmul.f32 %v612, %v459
    %v674 = vmul.f32 %v617, %v462
    %v675 = vmul.f32 %v622, %v467
    %v676 = vmul.f32 %v627, %v470
    %v677 = vmul.f32 %v632, %v475
    %v678 = vmul.f32 %v637, %v478
    %v679 = vmul.f32 %v642, %v483
    %v680 = vmul.f32 %v647, %v486
    %v681 = vpack.c.bf16 %v650, %v649
    %v682 = vpack.c.bf16 %v652, %v651
    %v683 = vpack.c.bf16 %v654, %v653
    %v684 = vpack.c.bf16 %v656, %v655
    %v685 = vpack.c.bf16 %v658, %v657
    %v686 = vpack.c.bf16 %v660, %v659
    %v687 = vpack.c.bf16 %v662, %v661
    %v688 = vpack.c.bf16 %v664, %v663
    %v689 = vpack.c.bf16 %v666, %v665
    %v690 = vpack.c.bf16 %v668, %v667
    %v691 = vpack.c.bf16 %v670, %v669
    %v692 = vpack.c.bf16 %v672, %v671
    %v693 = vpack.c.bf16 %v674, %v673
    %v694 = vpack.c.bf16 %v676, %v675
    %v695 = vpack.c.bf16 %v678, %v677
    %v696 = vpack.c.bf16 %v680, %v679
    %697 = vmatprep.subr.bf16.mxu0 0
    %698 = vmatpush1.bf16.msra.mxu0 %v681
    %699 = vmatprep.subr.bf16.mxu0 0
    %700 = vmatpush1.bf16.msra.mxu0 %v682
    %701 = vmatprep.subr.bf16.mxu0 0
    %702 = vmatpush1.bf16.msra.mxu0 %v683
    %703 = vmatprep.subr.bf16.mxu0 0
    %704 = vmatpush1.bf16.msra.mxu0 %v684
    %705 = vmatprep.subr.bf16.mxu0 0
    %706 = vmatpush1.bf16.msra.mxu0 %v685
    %707 = vmatprep.subr.bf16.mxu0 0
    %708 = vmatpush1.bf16.msra.mxu0 %v686
    %709 = vmatprep.subr.bf16.mxu0 0
    %710 = vmatpush1.bf16.msra.mxu0 %v687
    %711 = vmatprep.subr.bf16.mxu0 0
    %712 = vmatpush1.bf16.msra.mxu0 %v688
    %713 = vmatprep.subr.bf16.mxu0 0
    %714 = vmatpush1.bf16.msra.mxu0 %v689
    %715 = vmatprep.subr.bf16.mxu0 0
    %716 = vmatpush1.bf16.msra.mxu0 %v690
    %717 = vmatprep.subr.bf16.mxu0 0
    %718 = vmatpush1.bf16.msra.mxu0 %v691
    %719 = vmatprep.subr.bf16.mxu0 0
    %720 = vmatpush1.bf16.msra.mxu0 %v692
    %721 = vmatprep.subr.bf16.mxu0 0
    %722 = vmatpush1.bf16.msra.mxu0 %v693
    %723 = vmatprep.subr.bf16.mxu0 0
    %724 = vmatpush1.bf16.msra.mxu0 %v694
    %725 = vmatprep.subr.bf16.mxu0 0
    %726 = vmatpush1.bf16.msra.mxu0 %v695
    %727 = vmatprep.subr.bf16.mxu0 0
    %728 = vmatpush1.bf16.msra.mxu0 %v696
    %729 = vmatprep.mubr.bf16.mxu0 %v73
    %730 = vmatmul.mubr.bf16.gmra.mrb[0].mxu0 %v72
    %v731 = vpop.f32.mrb[0].mxu0
    %v732 = vadd.f32 0.0, %v731
    %v733 = vpop.f32.mrb[0].mxu0
    %v734 = vpop.f32.mrb[0].mxu0
    %v735 = vadd.f32 0.0, %v734
    %v736 = vpop.f32.mrb[0].mxu0
    %737 = vmatprep.mubr.bf16.mxu0 %v75
    %738 = vmatmul.mubr.bf16.gmra.mrb[0].mxu0 %v74
    %v739 = vpop.f32.mrb[0].mxu0
    %v740 = vadd.f32 0.0, %v739
    %v741 = vpop.f32.mrb[0].mxu0
    %v742 = vpop.f32.mrb[0].mxu0
    %v743 = vadd.f32 0.0, %v742
    %v744 = vpop.f32.mrb[0].mxu0
    %745 = vmatprep.mubr.bf16.mxu0 %v77
    %746 = vmatmul.mubr.bf16.gmra.mrb[0].mxu0 %v76
    %v747 = vpop.f32.mrb[0].mxu0
    %v748 = vadd.f32 0.0, %v747
    %v749 = vpop.f32.mrb[0].mxu0
    %v750 = vpop.f32.mrb[0].mxu0
    %v751 = vadd.f32 0.0, %v750
    %v752 = vpop.f32.mrb[0].mxu0
    %753 = vmatprep.mubr.bf16.mxu0 %v79
    %754 = vmatmul.mubr.bf16.gmra.mrb[0].mxu0 %v78
    %v755 = vpop.f32.mrb[0].mxu0
    %v756 = vadd.f32 0.0, %v755
    %v757 = vpop.f32.mrb[0].mxu0
    %v758 = vpop.f32.mrb[0].mxu0
    %v759 = vadd.f32 0.0, %v758
    %v760 = vpop.f32.mrb[0].mxu0
    %761 = vmatprep.mubr.bf16.mxu0 %v81
    %762 = vmatmul.mubr.bf16.gmra.mrb[0].mxu0 %v80
    %v763 = vpop.f32.mrb[0].mxu0
    %v764 = vadd.f32 0.0, %v763
    %v765 = vpop.f32.mrb[0].mxu0
    %v766 = vpop.f32.mrb[0].mxu0
    %v767 = vadd.f32 0.0, %v766
    %v768 = vpop.f32.mrb[0].mxu0
    %769 = vmatprep.mubr.bf16.mxu0 %v83
    %770 = vmatmul.mubr.bf16.gmra.mrb[0].mxu0 %v82
    %v771 = vpop.f32.mrb[0].mxu0
    %v772 = vadd.f32 0.0, %v771
    %v773 = vpop.f32.mrb[0].mxu0
    %v774 = vpop.f32.mrb[0].mxu0
    %v775 = vadd.f32 0.0, %v774
    %v776 = vpop.f32.mrb[0].mxu0
    %777 = vmatprep.mubr.bf16.mxu0 %v85
    %778 = vmatmul.mubr.bf16.gmra.mrb[0].mxu0 %v84
    %v779 = vpop.f32.mrb[0].mxu0
    %v780 = vadd.f32 0.0, %v779
    %v781 = vpop.f32.mrb[0].mxu0
    %v782 = vpop.f32.mrb[0].mxu0
    %v783 = vadd.f32 0.0, %v782
    %v784 = vpop.f32.mrb[0].mxu0
    %785 = vmatprep.mubr.bf16.mxu0 %v87
    %786 = vmatmul.mubr.bf16.gmra.mrb[0].mxu0 %v86
    %v787 = vpop.f32.mrb[0].mxu0
    %v788 = vadd.f32 0.0, %v787
    %v789 = vpop.f32.mrb[0].mxu0
    %v790 = vpop.f32.mrb[0].mxu0
    %v791 = vadd.f32 0.0, %v790
    %v792 = vpop.f32.mrb[0].mxu0
    %793 = vmatprep.mubr.bf16.mxu0 %v89
    %794 = vmatmul.mubr.bf16.gmra.mrb[0].mxu0 %v88
    %v795 = vpop.f32.mrb[0].mxu0
    %v796 = vadd.f32 0.0, %v795
    %v797 = vpop.f32.mrb[0].mxu0
    %v798 = vpop.f32.mrb[0].mxu0
    %v799 = vadd.f32 0.0, %v798
    %v800 = vpop.f32.mrb[0].mxu0
    %801 = vmatprep.mubr.bf16.mxu0 %v91
    %802 = vmatmul.mubr.bf16.gmra.mrb[0].mxu0 %v90
    %v803 = vpop.f32.mrb[0].mxu0
    %v804 = vadd.f32 0.0, %v803
    %v805 = vpop.f32.mrb[0].mxu0
    %v806 = vpop.f32.mrb[0].mxu0
    %v807 = vadd.f32 0.0, %v806
    %v808 = vpop.f32.mrb[0].mxu0
    %809 = vmatprep.mubr.bf16.mxu0 %v93
    %810 = vmatmul.mubr.bf16.gmra.mrb[0].mxu0 %v92
    %v811 = vpop.f32.mrb[0].mxu0
    %v812 = vadd.f32 0.0, %v811
    %v813 = vpop.f32.mrb[0].mxu0
    %v814 = vpop.f32.mrb[0].mxu0
    %v815 = vadd.f32 0.0, %v814
    %v816 = vpop.f32.mrb[0].mxu0
    %817 = vmatprep.mubr.bf16.mxu0 %v95
    %818 = vmatmul.mubr.bf16.gmra.mrb[0].mxu0 %v94
    %v819 = vpop.f32.mrb[0].mxu0
    %v820 = vadd.f32 0.0, %v819
    %v821 = vpop.f32.mrb[0].mxu0
    %v822 = vpop.f32.mrb[0].mxu0
    %v823 = vadd.f32 0.0, %v822
    %v824 = vpop.f32.mrb[0].mxu0
    %825 = vmatprep.mubr.bf16.mxu0 %v97
    %826 = vmatmul.mubr.bf16.gmra.mrb[0].mxu0 %v96
    %v827 = vpop.f32.mrb[0].mxu0
    %v828 = vadd.f32 0.0, %v827
    %v829 = vpop.f32.mrb[0].mxu0
    %v830 = vpop.f32.mrb[0].mxu0
    %v831 = vadd.f32 0.0, %v830
    %v832 = vpop.f32.mrb[0].mxu0
    %833 = vmatprep.mubr.bf16.mxu0 %v99
    %834 = vmatmul.mubr.bf16.gmra.mrb[0].mxu0 %v98
    %v835 = vpop.f32.mrb[0].mxu0
    %v836 = vadd.f32 0.0, %v835
    %v837 = vpop.f32.mrb[0].mxu0
    %v838 = vpop.f32.mrb[0].mxu0
    %v839 = vadd.f32 0.0, %v838
    %v840 = vpop.f32.mrb[0].mxu0
    %841 = vmatprep.mubr.bf16.mxu0 %v101
    %842 = vmatmul.mubr.bf16.gmra.mrb[0].mxu0 %v100
    %v843 = vpop.f32.mrb[0].mxu0
    %v844 = vadd.f32 0.0, %v843
    %v845 = vpop.f32.mrb[0].mxu0
    %v846 = vpop.f32.mrb[0].mxu0
    %v847 = vadd.f32 0.0, %v846
    %v848 = vpop.f32.mrb[0].mxu0
    %849 = vmatprep.mubr.bf16.mxu0 %v103
    %850 = vmatmul.mubr.bf16.gmra.mrb[0].mxu0 %v102
    %v851 = vpop.f32.mrb[0].mxu0
    %v852 = vadd.f32 0.0, %v851
    %v853 = vpop.f32.mrb[0].mxu0
    %v854 = vpop.f32.mrb[0].mxu0
    %v855 = vadd.f32 0.0, %v854
    %v856 = vpop.f32.mrb[0].mxu0
    %857 = vdwg.mxu0
    %v858 = vmul.f32 %v492, %v732
    %v859 = vmul.f32 %v497, %v735
    %v860 = vmul.f32 %v502, %v740
    %v861 = vmul.f32 %v507, %v743
    %v862 = vmul.f32 %v512, %v748
    %v863 = vmul.f32 %v517, %v751
    %v864 = vmul.f32 %v522, %v756
    %v865 = vmul.f32 %v527, %v759
    %v866 = vmul.f32 %v532, %v764
    %v867 = vmul.f32 %v537, %v767
    %v868 = vmul.f32 %v542, %v772
    %v869 = vmul.f32 %v547, %v775
    %v870 = vmul.f32 %v552, %v780
    %v871 = vmul.f32 %v557, %v783
    %v872 = vmul.f32 %v562, %v788
    %v873 = vmul.f32 %v567, %v791
    %v874 = vmul.f32 %v572, %v796
    %v875 = vmul.f32 %v577, %v799
    %v876 = vmul.f32 %v582, %v804
    %v877 = vmul.f32 %v587, %v807
    %v878 = vmul.f32 %v592, %v812
    %v879 = vmul.f32 %v597, %v815
    %v880 = vmul.f32 %v602, %v820
    %v881 = vmul.f32 %v607, %v823
    %v882 = vmul.f32 %v612, %v828
    %v883 = vmul.f32 %v617, %v831
    %v884 = vmul.f32 %v622, %v836
    %v885 = vmul.f32 %v627, %v839
    %v886 = vmul.f32 %v632, %v844
    %v887 = vmul.f32 %v637, %v847
    %v888 = vmul.f32 %v642, %v852
    %v889 = vmul.f32 %v647, %v855
    %v890 = vld [vmem:[%s4] sm:$0x1]
    %v892 = vlaneseq
    %v893 = vshrl.u32 %v892, 7
    %v894 = vsub.s32 0, %v893
    %v895 = vrot.slane %v890, %v894
    %v897 = vadd.f32 %v858, %v895
    %v898 = vadd.f32 %v859, %v895
    %v899 = vadd.f32 %v860, %v895
    %v900 = vadd.f32 %v861, %v895
    %v901 = vadd.f32 %v862, %v895
    %v902 = vadd.f32 %v863, %v895
    %v903 = vadd.f32 %v864, %v895
    %v904 = vadd.f32 %v865, %v895
    %v905 = vadd.f32 %v866, %v895
    %v906 = vadd.f32 %v867, %v895
    %v907 = vadd.f32 %v868, %v895
    %v908 = vadd.f32 %v869, %v895
    %v909 = vadd.f32 %v870, %v895
    %v910 = vadd.f32 %v871, %v895
    %v911 = vadd.f32 %v872, %v895
    %v912 = vadd.f32 %v873, %v895
    %v913 = vadd.f32 %v874, %v895
    %v914 = vadd.f32 %v875, %v895
    %v915 = vadd.f32 %v876, %v895
    %v916 = vadd.f32 %v877, %v895
    %v917 = vadd.f32 %v878, %v895
    %v918 = vadd.f32 %v879, %v895
    %v919 = vadd.f32 %v880, %v895
    %v920 = vadd.f32 %v881, %v895
    %v921 = vadd.f32 %v882, %v895
    %v922 = vadd.f32 %v883, %v895
    %v923 = vadd.f32 %v884, %v895
    %v924 = vadd.f32 %v885, %v895
    %v925 = vadd.f32 %v886, %v895
    %v926 = vadd.f32 %v887, %v895
    %v927 = vadd.f32 %v888, %v895
    %v928 = vadd.f32 %v889, %v895
    %v929 = vmax.f32 %v897, 0.0
    %v930 = vmax.f32 %v898, 0.0
    %v931 = vmax.f32 %v899, 0.0
    %v932 = vmax.f32 %v900, 0.0
    %v933 = vmax.f32 %v901, 0.0
    %v934 = vmax.f32 %v902, 0.0
    %v935 = vmax.f32 %v903, 0.0
    %v936 = vmax.f32 %v904, 0.0
    %v937 = vmax.f32 %v905, 0.0
    %v938 = vmax.f32 %v906, 0.0
    %v939 = vmax.f32 %v907, 0.0
    %v940 = vmax.f32 %v908, 0.0
    %v941 = vmax.f32 %v909, 0.0
    %v942 = vmax.f32 %v910, 0.0
    %v943 = vmax.f32 %v911, 0.0
    %v944 = vmax.f32 %v912, 0.0
    %v945 = vmax.f32 %v913, 0.0
    %v946 = vmax.f32 %v914, 0.0
    %v947 = vmax.f32 %v915, 0.0
    %v948 = vmax.f32 %v916, 0.0
    %v949 = vmax.f32 %v917, 0.0
    %v950 = vmax.f32 %v918, 0.0
    %v951 = vmax.f32 %v919, 0.0
    %v952 = vmax.f32 %v920, 0.0
    %v953 = vmax.f32 %v921, 0.0
    %v954 = vmax.f32 %v922, 0.0
    %v955 = vmax.f32 %v923, 0.0
    %v956 = vmax.f32 %v924, 0.0
    %v957 = vmax.f32 %v925, 0.0
    %v958 = vmax.f32 %v926, 0.0
    %v959 = vmax.f32 %v927, 0.0
    %v960 = vmax.f32 %v928, 0.0
    %v961 = vpack.c.bf16 %v930, %v929
    %v962 = vpack.c.bf16 %v932, %v931
    %v963 = vpack.c.bf16 %v934, %v933
    %v964 = vpack.c.bf16 %v936, %v935
    %v965 = vpack.c.bf16 %v938, %v937
    %v966 = vpack.c.bf16 %v940, %v939
    %v967 = vpack.c.bf16 %v942, %v941
    %v968 = vpack.c.bf16 %v944, %v943
    %v969 = vpack.c.bf16 %v946, %v945
    %v970 = vpack.c.bf16 %v948, %v947
    %v971 = vpack.c.bf16 %v950, %v949
    %v972 = vpack.c.bf16 %v952, %v951
    %v973 = vpack.c.bf16 %v954, %v953
    %v974 = vpack.c.bf16 %v956, %v955
    %v975 = vpack.c.bf16 %v958, %v957
    %v976 = vpack.c.bf16 %v960, %v959
    %v977 = vld [vmem:[#allocation5] sm:$0xf]
    %v978 = vld [vmem:[#allocation5 + $0x4] sm:$0xf]
    %v979 = vld [vmem:[#allocation5 + $0x8] sm:$0xf]
    %v980 = vld [vmem:[#allocation5 + $0xc] sm:$0xf]
    %v981 = vld [vmem:[#allocation5 + $0x10] sm:$0xf]
    %v982 = vld [vmem:[#allocation5 + $0x14] sm:$0xf]
    %v983 = vld [vmem:[#allocation5 + $0x18] sm:$0xf]
    %v984 = vld [vmem:[#allocation5 + $0x1c] sm:$0xf]
    %v985 = vld [vmem:[#allocation5 + $0x20] sm:$0xf]
    %v986 = vld [vmem:[#allocation5 + $0x24] sm:$0xf]
    %v987 = vld [vmem:[#allocation5 + $0x28] sm:$0xf]
    %v988 = vld [vmem:[#allocation5 + $0x2c] sm:$0xf]
    %v989 = vld [vmem:[#allocation5 + $0x30] sm:$0xf]
    %v990 = vld [vmem:[#allocation5 + $0x34] sm:$0xf]
    %v991 = vld [vmem:[#allocation5 + $0x38] sm:$0xf]
    %v992 = vld [vmem:[#allocation5 + $0x3c] sm:$0xf]
    %v1009 = vunpack.c.l.b16 %v977
    %v1010 = vunpack.c.l.b16 %v978
    %v1011 = vunpack.c.l.b16 %v979
    %v1012 = vunpack.c.l.b16 %v980
    %v1013 = vunpack.c.l.b16 %v981
    %v1014 = vunpack.c.l.b16 %v982
    %v1015 = vunpack.c.l.b16 %v983
    %v1016 = vunpack.c.l.b16 %v984
    %v1017 = vunpack.c.l.b16 %v985
    %v1018 = vunpack.c.l.b16 %v986
    %v1019 = vunpack.c.l.b16 %v987
    %v1020 = vunpack.c.l.b16 %v988
    %v1021 = vunpack.c.l.b16 %v989
    %v1022 = vunpack.c.l.b16 %v990
    %v1023 = vunpack.c.l.b16 %v991
    %v1024 = vunpack.c.l.b16 %v992
    %v1025 = vpack.c.b16 %v1010, %v1009
    %v1026 = vpack.c.b16 %v1012, %v1011
    %v1027 = vpack.c.b16 %v1014, %v1013
    %v1028 = vpack.c.b16 %v1016, %v1015
    %v1029 = vpack.c.b16 %v1018, %v1017
    %v1030 = vpack.c.b16 %v1020, %v1019
    %v1031 = vpack.c.b16 %v1022, %v1021
    %v1032 = vpack.c.b16 %v1024, %v1023
    %1041 = vmatprep.subr.bf16.mxu0 0
    %1042 = vmatpush1.bf16.msra.mxu0 %v1025
    %1043 = vmatprep.subr.bf16.mxu0 0
    %1044 = vmatpush1.bf16.msra.mxu0 %v1026
    %1045 = vmatprep.subr.bf16.mxu0 0
    %1046 = vmatpush1.bf16.msra.mxu0 %v1027
    %1047 = vmatprep.subr.bf16.mxu0 0
    %1048 = vmatpush1.bf16.msra.mxu0 %v1028
    %1049 = vmatprep.subr.bf16.mxu0 0
    %1050 = vmatpush1.bf16.msra.mxu0 %v1029
    %1051 = vmatprep.subr.bf16.mxu0 0
    %1052 = vmatpush1.bf16.msra.mxu0 %v1030
    %1053 = vmatprep.subr.bf16.mxu0 0
    %1054 = vmatpush1.bf16.msra.mxu0 %v1031
    %1055 = vmatprep.subr.bf16.mxu0 0
    %1056 = vmatpush1.bf16.msra.mxu0 %v1032
    %1057 = vmatprep.subr.bf16.mxu0 0
    %1058 = vmatpush1.bf16.msra.mxu0 0
    %1059 = vmatprep.subr.bf16.mxu0 0
    %1060 = vmatpush1.bf16.msra.mxu0 0
    %1061 = vmatprep.subr.bf16.mxu0 0
    %1062 = vmatpush1.bf16.msra.mxu0 0
    %1063 = vmatprep.subr.bf16.mxu0 0
    %1064 = vmatpush1.bf16.msra.mxu0 0
    %1065 = vmatprep.subr.bf16.mxu0 0
    %1066 = vmatpush1.bf16.msra.mxu0 0
    %1067 = vmatprep.subr.bf16.mxu0 0
    %1068 = vmatpush1.bf16.msra.mxu0 0
    %1069 = vmatprep.subr.bf16.mxu0 0
    %1070 = vmatpush1.bf16.msra.mxu0 0
    %1071 = vmatprep.subr.bf16.mxu0 0
    %1072 = vmatpush1.bf16.msra.mxu0 0
    %1073 = vmatprep.mubr.bf16.mxu0 0
    %1074 = vmatmul.mubr.bf16.gmra.mrb[0].mxu0 %v961
    %v1075 = vpop.f32.mrb[0].mxu0
    %v1076 = vadd.f32 0.0, %v1075
    %v1077 = vpop.f32.mrb[0].mxu0
    %v1078 = vpop.f32.mrb[0].mxu0
    %v1079 = vadd.f32 0.0, %v1078
    %v1080 = vpop.f32.mrb[0].mxu0
    %1081 = vmatprep.mubr.bf16.mxu0 0
    %1082 = vmatmul.mubr.bf16.gmra.mrb[0].mxu0 %v962
    %v1083 = vpop.f32.mrb[0].mxu0
    %v1084 = vadd.f32 0.0, %v1083
    %v1085 = vpop.f32.mrb[0].mxu0
    %v1086 = vpop.f32.mrb[0].mxu0
    %v1087 = vadd.f32 0.0, %v1086
    %v1088 = vpop.f32.mrb[0].mxu0
    %1089 = vmatprep.mubr.bf16.mxu0 0
    %1090 = vmatmul.mubr.bf16.gmra.mrb[0].mxu0 %v963
    %v1091 = vpop.f32.mrb[0].mxu0
    %v1092 = vadd.f32 0.0, %v1091
    %v1093 = vpop.f32.mrb[0].mxu0
    %v1094 = vpop.f32.mrb[0].mxu0
    %v1095 = vadd.f32 0.0, %v1094
    %v1096 = vpop.f32.mrb[0].mxu0
    %1097 = vmatprep.mubr.bf16.mxu0 0
    %1098 = vmatmul.mubr.bf16.gmra.mrb[0].mxu0 %v964
    %v1099 = vpop.f32.mrb[0].mxu0
    %v1100 = vadd.f32 0.0, %v1099
    %v1101 = vpop.f32.mrb[0].mxu0
    %v1102 = vpop.f32.mrb[0].mxu0
    %v1103 = vadd.f32 0.0, %v1102
    %v1104 = vpop.f32.mrb[0].mxu0
    %1105 = vmatprep.mubr.bf16.mxu0 0
    %1106 = vmatmul.mubr.bf16.gmra.mrb[0].mxu0 %v965
    %v1107 = vpop.f32.mrb[0].mxu0
    %v1108 = vadd.f32 0.0, %v1107
    %v1109 = vpop.f32.mrb[0].mxu0
    %v1110 = vpop.f32.mrb[0].mxu0
    %v1111 = vadd.f32 0.0, %v1110
    %v1112 = vpop.f32.mrb[0].mxu0
    %1113 = vmatprep.mubr.bf16.mxu0 0
    %1114 = vmatmul.mubr.bf16.gmra.mrb[0].mxu0 %v966
    %v1115 = vpop.f32.mrb[0].mxu0
    %v1116 = vadd.f32 0.0, %v1115
    %v1117 = vpop.f32.mrb[0].mxu0
    %v1118 = vpop.f32.mrb[0].mxu0
    %v1119 = vadd.f32 0.0, %v1118
    %v1120 = vpop.f32.mrb[0].mxu0
    %1121 = vmatprep.mubr.bf16.mxu0 0
    %1122 = vmatmul.mubr.bf16.gmra.mrb[0].mxu0 %v967
    %v1123 = vpop.f32.mrb[0].mxu0
    %v1124 = vadd.f32 0.0, %v1123
    %v1125 = vpop.f32.mrb[0].mxu0
    %v1126 = vpop.f32.mrb[0].mxu0
    %v1127 = vadd.f32 0.0, %v1126
    %v1128 = vpop.f32.mrb[0].mxu0
    %1129 = vmatprep.mubr.bf16.mxu0 0
    %1130 = vmatmul.mubr.bf16.gmra.mrb[0].mxu0 %v968
    %v1131 = vpop.f32.mrb[0].mxu0
    %v1132 = vadd.f32 0.0, %v1131
    %v1133 = vpop.f32.mrb[0].mxu0
    %v1134 = vpop.f32.mrb[0].mxu0
    %v1135 = vadd.f32 0.0, %v1134
    %v1136 = vpop.f32.mrb[0].mxu0
    %1137 = vmatprep.mubr.bf16.mxu0 0
    %1138 = vmatmul.mubr.bf16.gmra.mrb[0].mxu0 %v969
    %v1139 = vpop.f32.mrb[0].mxu0
    %v1140 = vadd.f32 0.0, %v1139
    %v1141 = vpop.f32.mrb[0].mxu0
    %v1142 = vpop.f32.mrb[0].mxu0
    %v1143 = vadd.f32 0.0, %v1142
    %v1144 = vpop.f32.mrb[0].mxu0
    %1145 = vmatprep.mubr.bf16.mxu0 0
    %1146 = vmatmul.mubr.bf16.gmra.mrb[0].mxu0 %v970
    %v1147 = vpop.f32.mrb[0].mxu0
    %v1148 = vadd.f32 0.0, %v1147
    %v1149 = vpop.f32.mrb[0].mxu0
    %v1150 = vpop.f32.mrb[0].mxu0
    %v1151 = vadd.f32 0.0, %v1150
    %v1152 = vpop.f32.mrb[0].mxu0
    %1153 = vmatprep.mubr.bf16.mxu0 0
    %1154 = vmatmul.mubr.bf16.gmra.mrb[0].mxu0 %v971
    %v1155 = vpop.f32.mrb[0].mxu0
    %v1156 = vadd.f32 0.0, %v1155
    %v1157 = vpop.f32.mrb[0].mxu0
    %v1158 = vpop.f32.mrb[0].mxu0
    %v1159 = vadd.f32 0.0, %v1158
    %v1160 = vpop.f32.mrb[0].mxu0
    %1161 = vmatprep.mubr.bf16.mxu0 0
    %1162 = vmatmul.mubr.bf16.gmra.mrb[0].mxu0 %v972
    %v1163 = vpop.f32.mrb[0].mxu0
    %v1164 = vadd.f32 0.0, %v1163
    %v1165 = vpop.f32.mrb[0].mxu0
    %v1166 = vpop.f32.mrb[0].mxu0
    %v1167 = vadd.f32 0.0, %v1166
    %v1168 = vpop.f32.mrb[0].mxu0
    %1169 = vmatprep.mubr.bf16.mxu0 0
    %1170 = vmatmul.mubr.bf16.gmra.mrb[0].mxu0 %v973
    %v1171 = vpop.f32.mrb[0].mxu0
    %v1172 = vadd.f32 0.0, %v1171
    %v1173 = vpop.f32.mrb[0].mxu0
    %v1174 = vpop.f32.mrb[0].mxu0
    %v1175 = vadd.f32 0.0, %v1174
    %v1176 = vpop.f32.mrb[0].mxu0
    %1177 = vmatprep.mubr.bf16.mxu0 0
    %1178 = vmatmul.mubr.bf16.gmra.mrb[0].mxu0 %v974
    %v1179 = vpop.f32.mrb[0].mxu0
    %v1180 = vadd.f32 0.0, %v1179
    %v1181 = vpop.f32.mrb[0].mxu0
    %v1182 = vpop.f32.mrb[0].mxu0
    %v1183 = vadd.f32 0.0, %v1182
    %v1184 = vpop.f32.mrb[0].mxu0
    %1185 = vmatprep.mubr.bf16.mxu0 0
    %1186 = vmatmul.mubr.bf16.gmra.mrb[0].mxu0 %v975
    %v1187 = vpop.f32.mrb[0].mxu0
    %v1188 = vadd.f32 0.0, %v1187
    %v1189 = vpop.f32.mrb[0].mxu0
    %v1190 = vpop.f32.mrb[0].mxu0
    %v1191 = vadd.f32 0.0, %v1190
    %v1192 = vpop.f32.mrb[0].mxu0
    %1193 = vmatprep.mubr.bf16.mxu0 0
    %1194 = vmatmul.mubr.bf16.gmra.mrb[0].mxu0 %v976
    %v1195 = vpop.f32.mrb[0].mxu0
    %v1196 = vadd.f32 0.0, %v1195
    %v1197 = vpop.f32.mrb[0].mxu0
    %v1198 = vpop.f32.mrb[0].mxu0
    %v1199 = vadd.f32 0.0, %v1198
    %v1200 = vpop.f32.mrb[0].mxu0
    %1201 = vdwg.mxu0
    %v1202 = vmul.f32 %v492, %v1076
    %v1203 = vmul.f32 %v497, %v1079
    %v1204 = vmul.f32 %v502, %v1084
    %v1205 = vmul.f32 %v507, %v1087
    %v1206 = vmul.f32 %v512, %v1092
    %v1207 = vmul.f32 %v517, %v1095
    %v1208 = vmul.f32 %v522, %v1100
    %v1209 = vmul.f32 %v527, %v1103
    %v1210 = vmul.f32 %v532, %v1108
    %v1211 = vmul.f32 %v537, %v1111
    %v1212 = vmul.f32 %v542, %v1116
    %v1213 = vmul.f32 %v547, %v1119
    %v1214 = vmul.f32 %v552, %v1124
    %v1215 = vmul.f32 %v557, %v1127
    %v1216 = vmul.f32 %v562, %v1132
    %v1217 = vmul.f32 %v567, %v1135
    %v1218 = vmul.f32 %v572, %v1140
    %v1219 = vmul.f32 %v577, %v1143
    %v1220 = vmul.f32 %v582, %v1148
    %v1221 = vmul.f32 %v587, %v1151
    %v1222 = vmul.f32 %v592, %v1156
    %v1223 = vmul.f32 %v597, %v1159
    %v1224 = vmul.f32 %v602, %v1164
    %v1225 = vmul.f32 %v607, %v1167
    %v1226 = vmul.f32 %v612, %v1172
    %v1227 = vmul.f32 %v617, %v1175
    %v1228 = vmul.f32 %v622, %v1180
    %v1229 = vmul.f32 %v627, %v1183
    %v1230 = vmul.f32 %v632, %v1188
    %v1231 = vmul.f32 %v637, %v1191
    %v1232 = vmul.f32 %v642, %v1196
    %v1233 = vmul.f32 %v647, %v1199
    %v1234 = vpack.c.bf16 %v1203, %v1202
    %v1235 = vpack.c.bf16 %v1205, %v1204
    %v1236 = vpack.c.bf16 %v1207, %v1206
    %v1237 = vpack.c.bf16 %v1209, %v1208
    %v1238 = vpack.c.bf16 %v1211, %v1210
    %v1239 = vpack.c.bf16 %v1213, %v1212
    %v1240 = vpack.c.bf16 %v1215, %v1214
    %v1241 = vpack.c.bf16 %v1217, %v1216
    %v1242 = vpack.c.bf16 %v1219, %v1218
    %v1243 = vpack.c.bf16 %v1221, %v1220
    %v1244 = vpack.c.bf16 %v1223, %v1222
    %v1245 = vpack.c.bf16 %v1225, %v1224
    %v1246 = vpack.c.bf16 %v1227, %v1226
    %v1247 = vpack.c.bf16 %v1229, %v1228
    %v1248 = vpack.c.bf16 %v1231, %v1230
    %v1249 = vpack.c.bf16 %v1233, %v1232
    %1250 = vmatprep.subr.bf16.mxu0 0
    %1251 = vmatpush1.bf16.msra.mxu0 %v1234
    %1252 = vmatprep.subr.bf16.mxu0 0
    %1253 = vmatpush1.bf16.msra.mxu0 %v1235
    %1254 = vmatprep.subr.bf16.mxu0 0
    %1255 = vmatpush1.bf16.msra.mxu0 %v1236
    %1256 = vmatprep.subr.bf16.mxu0 0
    %1257 = vmatpush1.bf16.msra.mxu0 %v1237
    %1258 = vmatprep.subr.bf16.mxu0 0
    %1259 = vmatpush1.bf16.msra.mxu0 %v1238
    %1260 = vmatprep.subr.bf16.mxu0 0
    %1261 = vmatpush1.bf16.msra.mxu0 %v1239
    %1262 = vmatprep.subr.bf16.mxu0 0
    %1263 = vmatpush1.bf16.msra.mxu0 %v1240
    %1264 = vmatprep.subr.bf16.mxu0 0
    %1265 = vmatpush1.bf16.msra.mxu0 %v1241
    %1266 = vmatprep.subr.bf16.mxu0 0
    %1267 = vmatpush1.bf16.msra.mxu0 %v1242
    %1268 = vmatprep.subr.bf16.mxu0 0
    %1269 = vmatpush1.bf16.msra.mxu0 %v1243
    %1270 = vmatprep.subr.bf16.mxu0 0
    %1271 = vmatpush1.bf16.msra.mxu0 %v1244
    %1272 = vmatprep.subr.bf16.mxu0 0
    %1273 = vmatpush1.bf16.msra.mxu0 %v1245
    %1274 = vmatprep.subr.bf16.mxu0 0
    %1275 = vmatpush1.bf16.msra.mxu0 %v1246
    %1276 = vmatprep.subr.bf16.mxu0 0
    %1277 = vmatpush1.bf16.msra.mxu0 %v1247
    %1278 = vmatprep.subr.bf16.mxu0 0
    %1279 = vmatpush1.bf16.msra.mxu0 %v1248
    %1280 = vmatprep.subr.bf16.mxu0 0
    %1281 = vmatpush1.bf16.msra.mxu0 %v1249
    %1282 = vmatprep.mubr.bf16.mxu0 %v73
    %1283 = vmatmul.mubr.bf16.gmra.mrb[0].mxu0 %v72
    %v1284 = vpop.f32.mrb[0].mxu0
    %v1285 = vadd.f32 0.0, %v1284
    %v1286 = vpop.f32.mrb[0].mxu0
    %v1287 = vpop.f32.mrb[0].mxu0
    %v1288 = vadd.f32 0.0, %v1287
    %v1289 = vpop.f32.mrb[0].mxu0
    %1290 = vmatprep.mubr.bf16.mxu0 %v75
    %1291 = vmatmul.mubr.bf16.gmra.mrb[0].mxu0 %v74
    %v1292 = vpop.f32.mrb[0].mxu0
    %v1293 = vadd.f32 0.0, %v1292
    %v1294 = vpop.f32.mrb[0].mxu0
    %v1295 = vpop.f32.mrb[0].mxu0
    %v1296 = vadd.f32 0.0, %v1295
    %v1297 = vpop.f32.mrb[0].mxu0
    %1298 = vmatprep.mubr.bf16.mxu0 %v77
    %1299 = vmatmul.mubr.bf16.gmra.mrb[0].mxu0 %v76
    %v1300 = vpop.f32.mrb[0].mxu0
    %v1301 = vadd.f32 0.0, %v1300
    %v1302 = vpop.f32.mrb[0].mxu0
    %v1303 = vpop.f32.mrb[0].mxu0
    %v1304 = vadd.f32 0.0, %v1303
    %v1305 = vpop.f32.mrb[0].mxu0
    %1306 = vmatprep.mubr.bf16.mxu0 %v79
    %1307 = vmatmul.mubr.bf16.gmra.mrb[0].mxu0 %v78
    %v1308 = vpop.f32.mrb[0].mxu0
    %v1309 = vadd.f32 0.0, %v1308
    %v1310 = vpop.f32.mrb[0].mxu0
    %v1311 = vpop.f32.mrb[0].mxu0
    %v1312 = vadd.f32 0.0, %v1311
    %v1313 = vpop.f32.mrb[0].mxu0
    %1314 = vmatprep.mubr.bf16.mxu0 %v81
    %1315 = vmatmul.mubr.bf16.gmra.mrb[0].mxu0 %v80
    %v1316 = vpop.f32.mrb[0].mxu0
    %v1317 = vadd.f32 0.0, %v1316
    %v1318 = vpop.f32.mrb[0].mxu0
    %v1319 = vpop.f32.mrb[0].mxu0
    %v1320 = vadd.f32 0.0, %v1319
    %v1321 = vpop.f32.mrb[0].mxu0
    %1322 = vmatprep.mubr.bf16.mxu0 %v83
    %1323 = vmatmul.mubr.bf16.gmra.mrb[0].mxu0 %v82
    %v1324 = vpop.f32.mrb[0].mxu0
    %v1325 = vadd.f32 0.0, %v1324
    %v1326 = vpop.f32.mrb[0].mxu0
    %v1327 = vpop.f32.mrb[0].mxu0
    %v1328 = vadd.f32 0.0, %v1327
    %v1329 = vpop.f32.mrb[0].mxu0
    %1330 = vmatprep.mubr.bf16.mxu0 %v85
    %1331 = vmatmul.mubr.bf16.gmra.mrb[0].mxu0 %v84
    %v1332 = vpop.f32.mrb[0].mxu0
    %v1333 = vadd.f32 0.0, %v1332
    %v1334 = vpop.f32.mrb[0].mxu0
    %v1335 = vpop.f32.mrb[0].mxu0
    %v1336 = vadd.f32 0.0, %v1335
    %v1337 = vpop.f32.mrb[0].mxu0
    %1338 = vmatprep.mubr.bf16.mxu0 %v87
    %1339 = vmatmul.mubr.bf16.gmra.mrb[0].mxu0 %v86
    %v1340 = vpop.f32.mrb[0].mxu0
    %v1341 = vadd.f32 0.0, %v1340
    %v1342 = vpop.f32.mrb[0].mxu0
    %v1343 = vpop.f32.mrb[0].mxu0
    %v1344 = vadd.f32 0.0, %v1343
    %v1345 = vpop.f32.mrb[0].mxu0
    %1346 = vmatprep.mubr.bf16.mxu0 %v89
    %1347 = vmatmul.mubr.bf16.gmra.mrb[0].mxu0 %v88
    %v1348 = vpop.f32.mrb[0].mxu0
    %v1349 = vadd.f32 0.0, %v1348
    %v1350 = vpop.f32.mrb[0].mxu0
    %v1351 = vpop.f32.mrb[0].mxu0
    %v1352 = vadd.f32 0.0, %v1351
    %v1353 = vpop.f32.mrb[0].mxu0
    %1354 = vmatprep.mubr.bf16.mxu0 %v91
    %1355 = vmatmul.mubr.bf16.gmra.mrb[0].mxu0 %v90
    %v1356 = vpop.f32.mrb[0].mxu0
    %v1357 = vadd.f32 0.0, %v1356
    %v1358 = vpop.f32.mrb[0].mxu0
    %v1359 = vpop.f32.mrb[0].mxu0
    %v1360 = vadd.f32 0.0, %v1359
    %v1361 = vpop.f32.mrb[0].mxu0
    %1362 = vmatprep.mubr.bf16.mxu0 %v93
    %1363 = vmatmul.mubr.bf16.gmra.mrb[0].mxu0 %v92
    %v1364 = vpop.f32.mrb[0].mxu0
    %v1365 = vadd.f32 0.0, %v1364
    %v1366 = vpop.f32.mrb[0].mxu0
    %v1367 = vpop.f32.mrb[0].mxu0
    %v1368 = vadd.f32 0.0, %v1367
    %v1369 = vpop.f32.mrb[0].mxu0
    %1370 = vmatprep.mubr.bf16.mxu0 %v95
    %1371 = vmatmul.mubr.bf16.gmra.mrb[0].mxu0 %v94
    %v1372 = vpop.f32.mrb[0].mxu0
    %v1373 = vadd.f32 0.0, %v1372
    %v1374 = vpop.f32.mrb[0].mxu0
    %v1375 = vpop.f32.mrb[0].mxu0
    %v1376 = vadd.f32 0.0, %v1375
    %v1377 = vpop.f32.mrb[0].mxu0
    %1378 = vmatprep.mubr.bf16.mxu0 %v97
    %1379 = vmatmul.mubr.bf16.gmra.mrb[0].mxu0 %v96
    %v1380 = vpop.f32.mrb[0].mxu0
    %v1381 = vadd.f32 0.0, %v1380
    %v1382 = vpop.f32.mrb[0].mxu0
    %v1383 = vpop.f32.mrb[0].mxu0
    %v1384 = vadd.f32 0.0, %v1383
    %v1385 = vpop.f32.mrb[0].mxu0
    %1386 = vmatprep.mubr.bf16.mxu0 %v99
    %1387 = vmatmul.mubr.bf16.gmra.mrb[0].mxu0 %v98
    %v1388 = vpop.f32.mrb[0].mxu0
    %v1389 = vadd.f32 0.0, %v1388
    %v1390 = vpop.f32.mrb[0].mxu0
    %v1391 = vpop.f32.mrb[0].mxu0
    %v1392 = vadd.f32 0.0, %v1391
    %v1393 = vpop.f32.mrb[0].mxu0
    %1394 = vmatprep.mubr.bf16.mxu0 %v101
    %1395 = vmatmul.mubr.bf16.gmra.mrb[0].mxu0 %v100
    %v1396 = vpop.f32.mrb[0].mxu0
    %v1397 = vadd.f32 0.0, %v1396
    %v1398 = vpop.f32.mrb[0].mxu0
    %v1399 = vpop.f32.mrb[0].mxu0
    %v1400 = vadd.f32 0.0, %v1399
    %v1401 = vpop.f32.mrb[0].mxu0
    %1402 = vmatprep.mubr.bf16.mxu0 %v103
    %1403 = vmatmul.mubr.bf16.gmra.mrb[0].mxu0 %v102
    %v1404 = vpop.f32.mrb[0].mxu0
    %v1405 = vadd.f32 0.0, %v1404
    %v1406 = vpop.f32.mrb[0].mxu0
    %v1407 = vpop.f32.mrb[0].mxu0
    %v1408 = vadd.f32 0.0, %v1407
    %v1409 = vpop.f32.mrb[0].mxu0
    %1410 = vdwg.mxu0
    %v1411 = vmul.f32 %v492, %v1285
    %v1412 = vmul.f32 %v497, %v1288
    %v1413 = vmul.f32 %v502, %v1293
    %v1414 = vmul.f32 %v507, %v1296
    %v1415 = vmul.f32 %v512, %v1301
    %v1416 = vmul.f32 %v517, %v1304
    %v1417 = vmul.f32 %v522, %v1309
    %v1418 = vmul.f32 %v527, %v1312
    %v1419 = vmul.f32 %v532, %v1317
    %v1420 = vmul.f32 %v537, %v1320
    %v1421 = vmul.f32 %v542, %v1325
    %v1422 = vmul.f32 %v547, %v1328
    %v1423 = vmul.f32 %v552, %v1333
    %v1424 = vmul.f32 %v557, %v1336
    %v1425 = vmul.f32 %v562, %v1341
    %v1426 = vmul.f32 %v567, %v1344
    %v1427 = vmul.f32 %v572, %v1349
    %v1428 = vmul.f32 %v577, %v1352
    %v1429 = vmul.f32 %v582, %v1357
    %v1430 = vmul.f32 %v587, %v1360
    %v1431 = vmul.f32 %v592, %v1365
    %v1432 = vmul.f32 %v597, %v1368
    %v1433 = vmul.f32 %v602, %v1373
    %v1434 = vmul.f32 %v607, %v1376
    %v1435 = vmul.f32 %v612, %v1381
    %v1436 = vmul.f32 %v617, %v1384
    %v1437 = vmul.f32 %v622, %v1389
    %v1438 = vmul.f32 %v627, %v1392
    %v1439 = vmul.f32 %v632, %v1397
    %v1440 = vmul.f32 %v637, %v1400
    %v1441 = vmul.f32 %v642, %v1405
    %v1442 = vmul.f32 %v647, %v1408
    %v1443 = vld [vmem:[%s6] sm:$0x1]
    %v1445 = vlaneseq
    %v1446 = vshrl.u32 %v1445, 7
    %v1447 = vsub.s32 0, %v1446
    %v1448 = vrot.slane %v1443, %v1447
    %v1450 = vadd.f32 %v1411, %v1448
    %v1451 = vadd.f32 %v1412, %v1448
    %v1452 = vadd.f32 %v1413, %v1448
    %v1453 = vadd.f32 %v1414, %v1448
    %v1454 = vadd.f32 %v1415, %v1448
    %v1455 = vadd.f32 %v1416, %v1448
    %v1456 = vadd.f32 %v1417, %v1448
    %v1457 = vadd.f32 %v1418, %v1448
    %v1458 = vadd.f32 %v1419, %v1448
    %v1459 = vadd.f32 %v1420, %v1448
    %v1460 = vadd.f32 %v1421, %v1448
    %v1461 = vadd.f32 %v1422, %v1448
    %v1462 = vadd.f32 %v1423, %v1448
    %v1463 = vadd.f32 %v1424, %v1448
    %v1464 = vadd.f32 %v1425, %v1448
    %v1465 = vadd.f32 %v1426, %v1448
    %v1466 = vadd.f32 %v1427, %v1448
    %v1467 = vadd.f32 %v1428, %v1448
    %v1468 = vadd.f32 %v1429, %v1448
    %v1469 = vadd.f32 %v1430, %v1448
    %v1470 = vadd.f32 %v1431, %v1448
    %v1471 = vadd.f32 %v1432, %v1448
    %v1472 = vadd.f32 %v1433, %v1448
    %v1473 = vadd.f32 %v1434, %v1448
    %v1474 = vadd.f32 %v1435, %v1448
    %v1475 = vadd.f32 %v1436, %v1448
    %v1476 = vadd.f32 %v1437, %v1448
    %v1477 = vadd.f32 %v1438, %v1448
    %v1478 = vadd.f32 %v1439, %v1448
    %v1479 = vadd.f32 %v1440, %v1448
    %v1480 = vadd.f32 %v1441, %v1448
    %v1481 = vadd.f32 %v1442, %v1448
    %1482 = vmax.xlane.f32.xlu0 %v1450
    %v1483 = vpop.xlane.xlu0 %1482
    %1484 = vmax.xlane.f32.xlu0 %v1451
    %v1485 = vpop.xlane.xlu0 %1484
    %1486 = vmax.xlane.f32.xlu0 %v1452
    %v1487 = vpop.xlane.xlu0 %1486
    %1488 = vmax.xlane.f32.xlu0 %v1453
    %v1489 = vpop.xlane.xlu0 %1488
    %1490 = vmax.xlane.f32.xlu0 %v1454
    %v1491 = vpop.xlane.xlu0 %1490
    %1492 = vmax.xlane.f32.xlu0 %v1455
    %v1493 = vpop.xlane.xlu0 %1492
    %1494 = vmax.xlane.f32.xlu0 %v1456
    %v1495 = vpop.xlane.xlu0 %1494
    %1496 = vmax.xlane.f32.xlu0 %v1457
    %v1497 = vpop.xlane.xlu0 %1496
    %1498 = vmax.xlane.f32.xlu0 %v1458
    %v1499 = vpop.xlane.xlu0 %1498
    %1500 = vmax.xlane.f32.xlu0 %v1459
    %v1501 = vpop.xlane.xlu0 %1500
    %1502 = vmax.xlane.f32.xlu0 %v1460
    %v1503 = vpop.xlane.xlu0 %1502
    %1504 = vmax.xlane.f32.xlu0 %v1461
    %v1505 = vpop.xlane.xlu0 %1504
    %1506 = vmax.xlane.f32.xlu0 %v1462
    %v1507 = vpop.xlane.xlu0 %1506
    %1508 = vmax.xlane.f32.xlu0 %v1463
    %v1509 = vpop.xlane.xlu0 %1508
    %1510 = vmax.xlane.f32.xlu0 %v1464
    %v1511 = vpop.xlane.xlu0 %1510
    %1512 = vmax.xlane.f32.xlu0 %v1465
    %v1513 = vpop.xlane.xlu0 %1512
    %1514 = vmax.xlane.f32.xlu0 %v1466
    %v1515 = vpop.xlane.xlu0 %1514
    %1516 = vmax.xlane.f32.xlu0 %v1467
    %v1517 = vpop.xlane.xlu0 %1516
    %1518 = vmax.xlane.f32.xlu0 %v1468
    %v1519 = vpop.xlane.xlu0 %1518
    %1520 = vmax.xlane.f32.xlu0 %v1469
    %v1521 = vpop.xlane.xlu0 %1520
    %1522 = vmax.xlane.f32.xlu0 %v1470
    %v1523 = vpop.xlane.xlu0 %1522
    %1524 = vmax.xlane.f32.xlu0 %v1471
    %v1525 = vpop.xlane.xlu0 %1524
    %1526 = vmax.xlane.f32.xlu0 %v1472
    %v1527 = vpop.xlane.xlu0 %1526
    %1528 = vmax.xlane.f32.xlu0 %v1473
    %v1529 = vpop.xlane.xlu0 %1528
    %1530 = vmax.xlane.f32.xlu0 %v1474
    %v1531 = vpop.xlane.xlu0 %1530
    %1532 = vmax.xlane.f32.xlu0 %v1475
    %v1533 = vpop.xlane.xlu0 %1532
    %1534 = vmax.xlane.f32.xlu0 %v1476
    %v1535 = vpop.xlane.xlu0 %1534
    %1536 = vmax.xlane.f32.xlu0 %v1477
    %v1537 = vpop.xlane.xlu0 %1536
    %1538 = vmax.xlane.f32.xlu0 %v1478
    %v1539 = vpop.xlane.xlu0 %1538
    %1540 = vmax.xlane.f32.xlu0 %v1479
    %v1541 = vpop.xlane.xlu0 %1540
    %1542 = vmax.xlane.f32.xlu0 %v1480
    %v1543 = vpop.xlane.xlu0 %1542
    %1544 = vmax.xlane.f32.xlu0 %v1481
    %v1545 = vpop.xlane.xlu0 %1544
    %v1546 = vsub.f32 %v1450, %v1483
    %v1547 = vsub.f32 %v1451, %v1485
    %v1548 = vsub.f32 %v1452, %v1487
    %v1549 = vsub.f32 %v1453, %v1489
    %v1550 = vsub.f32 %v1454, %v1491
    %v1551 = vsub.f32 %v1455, %v1493
    %v1552 = vsub.f32 %v1456, %v1495
    %v1553 = vsub.f32 %v1457, %v1497
    %v1554 = vsub.f32 %v1458, %v1499
    %v1555 = vsub.f32 %v1459, %v1501
    %v1556 = vsub.f32 %v1460, %v1503
    %v1557 = vsub.f32 %v1461, %v1505
    %v1558 = vsub.f32 %v1462, %v1507
    %v1559 = vsub.f32 %v1463, %v1509
    %v1560 = vsub.f32 %v1464, %v1511
    %v1561 = vsub.f32 %v1465, %v1513
    %v1562 = vsub.f32 %v1466, %v1515
    %v1563 = vsub.f32 %v1467, %v1517
    %v1564 = vsub.f32 %v1468, %v1519
    %v1565 = vsub.f32 %v1469, %v1521
    %v1566 = vsub.f32 %v1470, %v1523
    %v1567 = vsub.f32 %v1471, %v1525
    %v1568 = vsub.f32 %v1472, %v1527
    %v1569 = vsub.f32 %v1473, %v1529
    %v1570 = vsub.f32 %v1474, %v1531
    %v1571 = vsub.f32 %v1475, %v1533
    %v1572 = vsub.f32 %v1476, %v1535
    %v1573 = vsub.f32 %v1477, %v1537
    %v1574 = vsub.f32 %v1478, %v1539
    %v1575 = vsub.f32 %v1479, %v1541
    %v1576 = vsub.f32 %v1480, %v1543
    %v1577 = vsub.f32 %v1481, %v1545
    %v1578 = vmul.f32 %v1546, 1.442695
    %v1579 = vpow.pop %v1578
    %v1580 = vmul.f32 %v1547, 1.442695
    %v1581 = vpow.pop %v1580
    %v1582 = vmul.f32 %v1548, 1.442695
    %v1583 = vpow.pop %v1582
    %v1584 = vmul.f32 %v1549, 1.442695
    %v1585 = vpow.pop %v1584
    %v1586 = vmul.f32 %v1550, 1.442695
    %v1587 = vpow.pop %v1586
    %v1588 = vmul.f32 %v1551, 1.442695
    %v1589 = vpow.pop %v1588
    %v1590 = vmul.f32 %v1552, 1.442695
    %v1591 = vpow.pop %v1590
    %v1592 = vmul.f32 %v1553, 1.442695
    %v1593 = vpow.pop %v1592
    %v1594 = vmul.f32 %v1554, 1.442695
    %v1595 = vpow.pop %v1594
    %v1596 = vmul.f32 %v1555, 1.442695
    %v1597 = vpow.pop %v1596
    %v1598 = vmul.f32 %v1556, 1.442695
    %v1599 = vpow.pop %v1598
    %v1600 = vmul.f32 %v1557, 1.442695
    %v1601 = vpow.pop %v1600
    %v1602 = vmul.f32 %v1558, 1.442695
    %v1603 = vpow.pop %v1602
    %v1604 = vmul.f32 %v1559, 1.442695
    %v1605 = vpow.pop %v1604
    %v1606 = vmul.f32 %v1560, 1.442695
    %v1607 = vpow.pop %v1606
    %v1608 = vmul.f32 %v1561, 1.442695
    %v1609 = vpow.pop %v1608
    %v1610 = vmul.f32 %v1562, 1.442695
    %v1611 = vpow.pop %v1610
    %v1612 = vmul.f32 %v1563, 1.442695
    %v1613 = vpow.pop %v1612
    %v1614 = vmul.f32 %v1564, 1.442695
    %v1615 = vpow.pop %v1614
    %v1616 = vmul.f32 %v1565, 1.442695
    %v1617 = vpow.pop %v1616
    %v1618 = vmul.f32 %v1566, 1.442695
    %v1619 = vpow.pop %v1618
    %v1620 = vmul.f32 %v1567, 1.442695
    %v1621 = vpow.pop %v1620
    %v1622 = vmul.f32 %v1568, 1.442695
    %v1623 = vpow.pop %v1622
    %v1624 = vmul.f32 %v1569, 1.442695
    %v1625 = vpow.pop %v1624
    %v1626 = vmul.f32 %v1570, 1.442695
    %v1627 = vpow.pop %v1626
    %v1628 = vmul.f32 %v1571, 1.442695
    %v1629 = vpow.pop %v1628
    %v1630 = vmul.f32 %v1572, 1.442695
    %v1631 = vpow.pop %v1630
    %v1632 = vmul.f32 %v1573, 1.442695
    %v1633 = vpow.pop %v1632
    %v1634 = vmul.f32 %v1574, 1.442695
    %v1635 = vpow.pop %v1634
    %v1636 = vmul.f32 %v1575, 1.442695
    %v1637 = vpow.pop %v1636
    %v1638 = vmul.f32 %v1576, 1.442695
    %v1639 = vpow.pop %v1638
    %v1640 = vmul.f32 %v1577, 1.442695
    %v1641 = vpow.pop %v1640
    %1642 = vadd.xlane.f32.xlu0 %v1579
    %v1643 = vpop.xlane.xlu0 %1642
    %1644 = vadd.xlane.f32.xlu0 %v1581
    %v1645 = vpop.xlane.xlu0 %1644
    %1646 = vadd.xlane.f32.xlu0 %v1583
    %v1647 = vpop.xlane.xlu0 %1646
    %1648 = vadd.xlane.f32.xlu0 %v1585
    %v1649 = vpop.xlane.xlu0 %1648
    %1650 = vadd.xlane.f32.xlu0 %v1587
    %v1651 = vpop.xlane.xlu0 %1650
    %1652 = vadd.xlane.f32.xlu0 %v1589
    %v1653 = vpop.xlane.xlu0 %1652
    %1654 = vadd.xlane.f32.xlu0 %v1591
    %v1655 = vpop.xlane.xlu0 %1654
    %1656 = vadd.xlane.f32.xlu0 %v1593
    %v1657 = vpop.xlane.xlu0 %1656
    %1658 = vadd.xlane.f32.xlu0 %v1595
    %v1659 = vpop.xlane.xlu0 %1658
    %1660 = vadd.xlane.f32.xlu0 %v1597
    %v1661 = vpop.xlane.xlu0 %1660
    %1662 = vadd.xlane.f32.xlu0 %v1599
    %v1663 = vpop.xlane.xlu0 %1662
    %1664 = vadd.xlane.f32.xlu0 %v1601
    %v1665 = vpop.xlane.xlu0 %1664
    %1666 = vadd.xlane.f32.xlu0 %v1603
    %v1667 = vpop.xlane.xlu0 %1666
    %1668 = vadd.xlane.f32.xlu0 %v1605
    %v1669 = vpop.xlane.xlu0 %1668
    %1670 = vadd.xlane.f32.xlu0 %v1607
    %v1671 = vpop.xlane.xlu0 %1670
    %1672 = vadd.xlane.f32.xlu0 %v1609
    %v1673 = vpop.xlane.xlu0 %1672
    %1674 = vadd.xlane.f32.xlu0 %v1611
    %v1675 = vpop.xlane.xlu0 %1674
    %1676 = vadd.xlane.f32.xlu0 %v1613
    %v1677 = vpop.xlane.xlu0 %1676
    %1678 = vadd.xlane.f32.xlu0 %v1615
    %v1679 = vpop.xlane.xlu0 %1678
    %1680 = vadd.xlane.f32.xlu0 %v1617
    %v1681 = vpop.xlane.xlu0 %1680
    %1682 = vadd.xlane.f32.xlu0 %v1619
    %v1683 = vpop.xlane.xlu0 %1682
    %1684 = vadd.xlane.f32.xlu0 %v1621
    %v1685 = vpop.xlane.xlu0 %1684
    %1686 = vadd.xlane.f32.xlu0 %v1623
    %v1687 = vpop.xlane.xlu0 %1686
    %1688 = vadd.xlane.f32.xlu0 %v1625
    %v1689 = vpop.xlane.xlu0 %1688
    %1690 = vadd.xlane.f32.xlu0 %v1627
    %v1691 = vpop.xlane.xlu0 %1690
    %1692 = vadd.xlane.f32.xlu0 %v1629
    %v1693 = vpop.xlane.xlu0 %1692
    %1694 = vadd.xlane.f32.xlu0 %v1631
    %v1695 = vpop.xlane.xlu0 %1694
    %1696 = vadd.xlane.f32.xlu0 %v1633
    %v1697 = vpop.xlane.xlu0 %1696
    %1698 = vadd.xlane.f32.xlu0 %v1635
    %v1699 = vpop.xlane.xlu0 %1698
    %1700 = vadd.xlane.f32.xlu0 %v1637
    %v1701 = vpop.xlane.xlu0 %1700
    %1702 = vadd.xlane.f32.xlu0 %v1639
    %v1703 = vpop.xlane.xlu0 %1702
    %1704 = vadd.xlane.f32.xlu0 %v1641
    %v1705 = vpop.xlane.xlu0 %1704
    %v1706 = vlog2.pop %v1643
    %v1707 = vmul.f32 %v1706, 0.6931472
    %v1708 = vlog2.pop %v1645
    %v1709 = vmul.f32 %v1708, 0.6931472
    %v1710 = vlog2.pop %v1647
    %v1711 = vmul.f32 %v1710, 0.6931472
    %v1712 = vlog2.pop %v1649
    %v1713 = vmul.f32 %v1712, 0.6931472
    %v1714 = vlog2.pop %v1651
    %v1715 = vmul.f32 %v1714, 0.6931472
    %v1716 = vlog2.pop %v1653
    %v1717 = vmul.f32 %v1716, 0.6931472
    %v1718 = vlog2.pop %v1655
    %v1719 = vmul.f32 %v1718, 0.6931472
    %v1720 = vlog2.pop %v1657
    %v1721 = vmul.f32 %v1720, 0.6931472
    %v1722 = vlog2.pop %v1659
    %v1723 = vmul.f32 %v1722, 0.6931472
    %v1724 = vlog2.pop %v1661
    %v1725 = vmul.f32 %v1724, 0.6931472
    %v1726 = vlog2.pop %v1663
    %v1727 = vmul.f32 %v1726, 0.6931472
    %v1728 = vlog2.pop %v1665
    %v1729 = vmul.f32 %v1728, 0.6931472
    %v1730 = vlog2.pop %v1667
    %v1731 = vmul.f32 %v1730, 0.6931472
    %v1732 = vlog2.pop %v1669
    %v1733 = vmul.f32 %v1732, 0.6931472
    %v1734 = vlog2.pop %v1671
    %v1735 = vmul.f32 %v1734, 0.6931472
    %v1736 = vlog2.pop %v1673
    %v1737 = vmul.f32 %v1736, 0.6931472
    %v1738 = vlog2.pop %v1675
    %v1739 = vmul.f32 %v1738, 0.6931472
    %v1740 = vlog2.pop %v1677
    %v1741 = vmul.f32 %v1740, 0.6931472
    %v1742 = vlog2.pop %v1679
    %v1743 = vmul.f32 %v1742, 0.6931472
    %v1744 = vlog2.pop %v1681
    %v1745 = vmul.f32 %v1744, 0.6931472
    %v1746 = vlog2.pop %v1683
    %v1747 = vmul.f32 %v1746, 0.6931472
    %v1748 = vlog2.pop %v1685
    %v1749 = vmul.f32 %v1748, 0.6931472
    %v1750 = vlog2.pop %v1687
    %v1751 = vmul.f32 %v1750, 0.6931472
    %v1752 = vlog2.pop %v1689
    %v1753 = vmul.f32 %v1752, 0.6931472
    %v1754 = vlog2.pop %v1691
    %v1755 = vmul.f32 %v1754, 0.6931472
    %v1756 = vlog2.pop %v1693
    %v1757 = vmul.f32 %v1756, 0.6931472
    %v1758 = vlog2.pop %v1695
    %v1759 = vmul.f32 %v1758, 0.6931472
    %v1760 = vlog2.pop %v1697
    %v1761 = vmul.f32 %v1760, 0.6931472
    %v1762 = vlog2.pop %v1699
    %v1763 = vmul.f32 %v1762, 0.6931472
    %v1764 = vlog2.pop %v1701
    %v1765 = vmul.f32 %v1764, 0.6931472
    %v1766 = vlog2.pop %v1703
    %v1767 = vmul.f32 %v1766, 0.6931472
    %v1768 = vlog2.pop %v1705
    %v1769 = vmul.f32 %v1768, 0.6931472
    %v1770 = vsub.f32 %v1546, %v1707
    %v1771 = vsub.f32 %v1547, %v1709
    %v1772 = vsub.f32 %v1548, %v1711
    %v1773 = vsub.f32 %v1549, %v1713
    %v1774 = vsub.f32 %v1550, %v1715
    %v1775 = vsub.f32 %v1551, %v1717
    %v1776 = vsub.f32 %v1552, %v1719
    %v1777 = vsub.f32 %v1553, %v1721
    %v1778 = vsub.f32 %v1554, %v1723
    %v1779 = vsub.f32 %v1555, %v1725
    %v1780 = vsub.f32 %v1556, %v1727
    %v1781 = vsub.f32 %v1557, %v1729
    %v1782 = vsub.f32 %v1558, %v1731
    %v1783 = vsub.f32 %v1559, %v1733
    %v1784 = vsub.f32 %v1560, %v1735
    %v1785 = vsub.f32 %v1561, %v1737
    %v1786 = vsub.f32 %v1562, %v1739
    %v1787 = vsub.f32 %v1563, %v1741
    %v1788 = vsub.f32 %v1564, %v1743
    %v1789 = vsub.f32 %v1565, %v1745
    %v1790 = vsub.f32 %v1566, %v1747
    %v1791 = vsub.f32 %v1567, %v1749
    %v1792 = vsub.f32 %v1568, %v1751
    %v1793 = vsub.f32 %v1569, %v1753
    %v1794 = vsub.f32 %v1570, %v1755
    %v1795 = vsub.f32 %v1571, %v1757
    %v1796 = vsub.f32 %v1572, %v1759
    %v1797 = vsub.f32 %v1573, %v1761
    %v1798 = vsub.f32 %v1574, %v1763
    %v1799 = vsub.f32 %v1575, %v1765
    %v1800 = vsub.f32 %v1576, %v1767
    %v1801 = vsub.f32 %v1577, %v1769
    %1802 = vst [vmem:[#allocation7] sm:$0xff] %v1770
    %1803 = vst [vmem:[#allocation7 + $0x8] sm:$0xff] %v1771
    %1804 = vst [vmem:[#allocation7 + $0x10] sm:$0xff] %v1772
    %1805 = vst [vmem:[#allocation7 + $0x18] sm:$0xff] %v1773
    %1806 = vst [vmem:[#allocation7 + $0x20] sm:$0xff] %v1774
    %1807 = vst [vmem:[#allocation7 + $0x28] sm:$0xff] %v1775
    %1808 = vst [vmem:[#allocation7 + $0x30] sm:$0xff] %v1776
    %1809 = vst [vmem:[#allocation7 + $0x38] sm:$0xff] %v1777
    %1810 = vst [vmem:[#allocation7 + $0x40] sm:$0xff] %v1778
    %1811 = vst [vmem:[#allocation7 + $0x48] sm:$0xff] %v1779
    %1812 = vst [vmem:[#allocation7 + $0x50] sm:$0xff] %v1780
    %1813 = vst [vmem:[#allocation7 + $0x58] sm:$0xff] %v1781
    %1814 = vst [vmem:[#allocation7 + $0x60] sm:$0xff] %v1782
    %1815 = vst [vmem:[#allocation7 + $0x68] sm:$0xff] %v1783
    %1816 = vst [vmem:[#allocation7 + $0x70] sm:$0xff] %v1784
    %1817 = vst [vmem:[#allocation7 + $0x78] sm:$0xff] %v1785
    %1818 = vst [vmem:[#allocation7 + $0x80] sm:$0xff] %v1786
    %1819 = vst [vmem:[#allocation7 + $0x88] sm:$0xff] %v1787
    %1820 = vst [vmem:[#allocation7 + $0x90] sm:$0xff] %v1788
    %1821 = vst [vmem:[#allocation7 + $0x98] sm:$0xff] %v1789
    %1822 = vst [vmem:[#allocation7 + $0xa0] sm:$0xff] %v1790
    %1823 = vst [vmem:[#allocation7 + $0xa8] sm:$0xff] %v1791
    %1824 = vst [vmem:[#allocation7 + $0xb0] sm:$0xff] %v1792
    %1825 = vst [vmem:[#allocation7 + $0xb8] sm:$0xff] %v1793
    %1826 = vst [vmem:[#allocation7 + $0xc0] sm:$0xff] %v1794
    %1827 = vst [vmem:[#allocation7 + $0xc8] sm:$0xff] %v1795
    %1828 = vst [vmem:[#allocation7 + $0xd0] sm:$0xff] %v1796
    %1829 = vst [vmem:[#allocation7 + $0xd8] sm:$0xff] %v1797
    %1830 = vst [vmem:[#allocation7 + $0xe0] sm:$0xff] %v1798
    %1831 = vst [vmem:[#allocation7 + $0xe8] sm:$0xff] %v1799
    %1832 = vst [vmem:[#allocation7 + $0xf0] sm:$0xff] %v1800
    %1833 = vst [vmem:[#allocation7 + $0xf8] sm:$0xff] %v1801
    // Predicated region
    $region38: #{tpu_custom_call.1} parent=1 // pred_check
      _
    $region39: #{tpu_custom_call.1} parent=1 // pred_check_branch
      %1835 = sbr.rel (0) target = $region41
    $region40: #{tpu_custom_call.1} parent=1 // pred_region
      %s1837 = ssub.s32 4096, 4096
      %1838 = vsyncadd [#allocation4], %s1837
      %s1839 = sshll.u32 [#allocation7], 4
      %s1840 = int_to_ptr.vmem [resolvable:$true] %s1839
      %1845 = dma.vmem_to_hbm [thread:$0]  %s1840, 4096, %s7, [#allocation4], 128, 128, 8
    $region41: #{tpu_custom_call.1} parent=1 // pred_fallthru
      _
    // Predicated region
    $region42: #{tpu_custom_call.1} parent=1 // pred_check
      _
    $region43: #{tpu_custom_call.1} parent=1 // pred_check_branch
      %1847 = sbr.rel (0) target = $region45
    $region44: #{tpu_custom_call.1} parent=1 // pred_region
      %1848 = dma.done [#allocation4], 4096
    $region45: #{tpu_custom_call.1} parent=1 // pred_fallthru
      _
    %1849 = vsyncpa [#allocation3], 1
    %1850 = vsyncpa [#allocation6], 1
    %1851 = vsyncpa [#allocation4], 1

</llo_original>
